<compile_context>
chip_gen: v7x
topology: tpu7x:2x2x1
jax: 0.10.0
libtpu: 0.0.40
codegen_flags: <defaults>
</compile_context>

<pallas_src>
import functools

import jax
import jax.numpy as jnp
from jax.experimental import pallas as pl
from jax.experimental.pallas import tpu as pltpu


# ----------------------------------------------------------------------------
# Fused Pallas kernel
# ----------------------------------------------------------------------------
def _fused_lstm_kernel(tok_ref, emb_ref, *refs, seq, batch, hidden, n_layers):
    """Whole-model kernel (single invocation, no grid).

    refs layout (after tok_ref, emb_ref):
      [3l .. 3l+3)   layer l: wih (D_l, 8H) bf16, whh (2H, 8H) bf16, b (1,8H) f32
      [3L]           fc_w (seq*2H, OUT) bf16 (direction routing folded in)
      [3L+1]         fc_b (1, OUT) f32
      [3L+2]         out  (B, OUT) f32
      [3L+3]         xin_scr (seq*B, 4H) f32 scratch (next-layer input slab)

    Gate lane layout (8H wide): [i_f i_b | f_f f_b | o_f o_b | g_f g_b].
    Hidden/cell layout: h(t) = [h_fwd(pos t) | h_bwd(pos seq-1-t)]  (2H lanes).
    """
    H, B = hidden, batch
    layer_refs = [refs[3 * l: 3 * (l + 1)] for l in range(n_layers)]
    fcw_ref = refs[3 * n_layers]
    fcb_ref = refs[3 * n_layers + 1]
    out_ref = refs[3 * n_layers + 2]
    xin_scr = refs[3 * n_layers + 3]

    vocab, _ = emb_ref.shape

    def cell(gates, c):
        # Three sigmoid gates live in one contiguous 6H-lane region -> 1 EUP
        # region; tanh gate in the last 2H lanes.  Elementwise math in f32.
        sig = jax.nn.sigmoid(gates[:, 0:6 * H])
        i = sig[:, 0:2 * H]
        f = sig[:, 2 * H:4 * H]
        o = sig[:, 4 * H:6 * H]
        g = jnp.tanh(gates[:, 6 * H:8 * H])
        c_new = f * c + i * g
        h_new = o * jnp.tanh(c_new)
        return h_new, c_new

    # ---- In-kernel embedding gather: one-hot @ table on the MXU ------------
    # tok rows 0:seq*B are ids in fwd row order (t*B+b), rows seq*B: are the
    # time-reversed ids.  Replaces XLA gather/reverse/concat + HBM round trip.
    tok = tok_ref[...]                                        # (2*seq*B, 1) i32
    onehot = (jax.lax.broadcasted_iota(jnp.int32, (2 * seq * B, vocab), 1)
              == tok).astype(jnp.float32)
    gath = jnp.dot(onehot, emb_ref[...],
                   preferred_element_type=jnp.float32)        # (2*seq*B, E)
    xin = jnp.concatenate([gath[0:seq * B], gath[seq * B:2 * seq * B]],
                          axis=1).astype(jnp.bfloat16)        # (seq*B, 2E)

    for l in range(n_layers):
        wih_ref, whh_ref, b_ref = layer_refs[l]
        last = (l == n_layers - 1)

        # Hoisted non-recurrent projection for all steps of both directions:
        # one bf16 matmul per layer, bias folded in.  Kept as a traced value.
        xp = (jnp.dot(xin, wih_ref[...], preferred_element_type=jnp.float32)
              + b_ref[...])                                   # (seq*B, 8H) f32

        whh = whh_ref[...]                                    # (2H,8H) bf16
        c = jnp.zeros((B, 2 * H), jnp.float32)
        hs = []                                               # h(t), t=0..seq-1

        # Fully unrolled recurrence; only the recurrent bf16 matmul and the
        # f32 cell update remain on the sequential path (no VMEM traffic).
        for t in range(seq):
            xpt = xp[t * B:(t + 1) * B, :]
            if t == 0:
                gates = xpt                                   # h0 == 0
            else:
                gates = xpt + jnp.dot(hs[-1].astype(jnp.bfloat16), whh,
                                      preferred_element_type=jnp.float32)
            h, c = cell(gates, c)
            hs.append(h)                 # h = [h_fwd(pos t) | h_bwd(pos seq-1-t)]

        if not last:
            # Next-layer input slab: row-block t = [h(t) | h(seq-1-t)] (128
            # lanes).  Lane-dense full-width stores, issued after the
            # recurrence; the next layer's W_ih rows are packed to match.
            for t in range(seq):
                xin_scr[t * B:(t + 1) * B, :] = jnp.concatenate(
                    [hs[t], hs[seq - 1 - t]], axis=1)
            xin = xin_scr[...].astype(jnp.bfloat16)           # (seq*B, 4H)
        else:
            # Lane-dense flattened slab built in registers; the direction sum
            # and position routing are folded into the packed FC weight.
            flat = jnp.concatenate(hs, axis=1).astype(jnp.bfloat16)  # (B, seq*2H)
            out_ref[...] = (jnp.dot(flat, fcw_ref[...],
                                    preferred_element_type=jnp.float32)
                            + fcb_ref[...])


# ----------------------------------------------------------------------------
# Host-side weight packing (done once, outside the hot path)
# ----------------------------------------------------------------------------
def pack_lstm_params(raw, *, hidden_dim, n_layers, max_len):
    """Pack per-direction weights into the fused kernel's layout (bf16).

    raw weights are stored pre-transposed: w_ih (D, 4H), w_hh (H, 4H),
    b (1, 4H) with PyTorch gate order (i, f, g, o); b = b_ih + b_hh.
    Packed gate order is (i, f, o, g) so the sigmoid gates are contiguous.
    """
    H = hidden_dim
    GATE_PERM = (0, 1, 3, 2)   # PyTorch gate p -> packed slot
    packed = {"embedding": raw["embedding"].astype(jnp.float32)}

    def place(w, direction):
        # (R, 4H) -> (R, 8H): PyTorch gate p of direction d lands in columns
        # [GATE_PERM[p]*2H + d*H, ... + H).
        R = w.shape[0]
        out = jnp.zeros((R, 8 * H), jnp.float32)
        off = 0 if direction == "f" else H
        for p in range(4):
            dst = GATE_PERM[p]
            out = out.at[:, dst * 2 * H + off: dst * 2 * H + off + H].set(
                w[:, p * H:(p + 1) * H])
        return out

    for l in range(n_layers):
        wf = place(raw[f"w_ih_l{l}"], "f")
        wb = place(raw[f"w_ih_l{l}_rev"], "b")
        if l == 0:
            # layer-0 input row: [emb(t,b) | emb(seq-1-t,b)]
            wih = jnp.concatenate([wf, wb], axis=0)                  # (2E, 8H)
        else:
            # layer-l (l>0) input row: [h_f(t) | h_b(r) | h_f(r) | h_b(t)],
            # r = seq-1-t  ->  reorder W_ih rows to match.
            wih = jnp.concatenate([wf[0:H], wb[H:2 * H],
                                   wb[0:H], wf[H:2 * H]], axis=0)    # (4H, 8H)
        packed[f"wih_l{l}"] = wih.astype(jnp.bfloat16)
        packed[f"whh_l{l}"] = jnp.concatenate(
            [place(raw[f"w_hh_l{l}"], "f"), place(raw[f"w_hh_l{l}_rev"], "b")],
            axis=0).astype(jnp.bfloat16)                             # (2H, 8H)
        packed[f"b_l{l}"] = (place(raw[f"b_l{l}"], "f")
                             + place(raw[f"b_l{l}_rev"], "b")).astype(jnp.float32)

    # FC weight: flat lane block t holds [h_fwd(t) | h_bwd(seq-1-t)], so rows
    # [t*2H:t*2H+H) take fc rows of position t and rows [t*2H+H:(t+1)*2H) take
    # fc rows of position seq-1-t.  This folds both the direction sum and the
    # position routing into one matmul.
    fw = raw["fc_w"]
    blocks = []
    for t in range(max_len):
        blocks.append(fw[t * H:(t + 1) * H])
        blocks.append(fw[(max_len - 1 - t) * H:(max_len - t) * H])
    packed["fc_w"] = jnp.concatenate(blocks, axis=0).astype(jnp.bfloat16)
    packed["fc_b"] = raw["fc_b"].astype(jnp.float32)
    return packed


def _maybe_squeeze(y):
    # PyTorch's .squeeze() drops every size-1 dim (including batch when B==1);
    # we only drop the trailing output dim to avoid silently losing batch.
    return jnp.squeeze(y, axis=-1) if y.shape[-1] == 1 else y


# ----------------------------------------------------------------------------
# Forward wrapper
# ----------------------------------------------------------------------------
def lstm_model_forward(x_tokens, packed, *, hidden_dim, n_layers):
    """Forward pass matching the PyTorch LSTM module (eval: dropout = id)."""
    seq, batch = x_tokens.shape
    H = hidden_dim
    out_dim = packed["fc_b"].shape[-1]

    # Tiny int32 glue only: token ids in fused row order (fwd, then reversed).
    tok_fwd = x_tokens.reshape(seq * batch)
    tok_rev = x_tokens[::-1].reshape(seq * batch)
    tok_all = jnp.concatenate([tok_fwd, tok_rev]).astype(jnp.int32)[:, None]

    inputs = [tok_all, packed["embedding"]]
    for l in range(n_layers):
        inputs += [packed[f"wih_l{l}"], packed[f"whh_l{l}"], packed[f"b_l{l}"]]
    inputs += [packed["fc_w"], packed["fc_b"]]

    in_specs = [pl.BlockSpec(a.shape, lambda: (0, 0)) for a in inputs]

    kernel = functools.partial(_fused_lstm_kernel, seq=seq, batch=batch,
                               hidden=H, n_layers=n_layers)

    y = pl.pallas_call(
        kernel,
        out_shape=jax.ShapeDtypeStruct((batch, out_dim), jnp.float32),
        in_specs=in_specs,
        out_specs=pl.BlockSpec((batch, out_dim), lambda: (0, 0)),
        scratch_shapes=[
            pltpu.VMEM((seq * batch, 4 * H), jnp.float32),   # next-layer input
        ],
    )(*inputs)
    return _maybe_squeeze(y)


# ----------------------------------------------------------------------------
# Pure-JAX reference (correctness sanity check, uses the raw f32 params)
# ----------------------------------------------------------------------------
def _ref_direction(x_seq, w_ih, w_hh, b, hidden_dim, reverse):
    H = hidden_dim
    xs = x_seq[::-1] if reverse else x_seq

    def step(carry, x):
        h, c = carry
        gates = x @ w_ih + h @ w_hh + b[0]
        i = jax.nn.sigmoid(gates[:, 0:H])
        f = jax.nn.sigmoid(gates[:, H:2 * H])
        g = jnp.tanh(gates[:, 2 * H:3 * H])
        o = jax.nn.sigmoid(gates[:, 3 * H:4 * H])
        c_new = f * c + i * g
        h_new = o * jnp.tanh(c_new)
        return (h_new, c_new), h_new

    h0 = jnp.zeros((x_seq.shape[1], H), jnp.float32)
    _, ys = jax.lax.scan(step, (h0, h0), xs)
    return ys[::-1] if reverse else ys


def _ref_forward(x_tokens, raw, *, hidden_dim, n_layers):
    layer_in = raw["embedding"][x_tokens].astype(jnp.float32)
    fwd = bwd = None
    for l in range(n_layers):
        fwd = _ref_direction(layer_in, raw[f"w_ih_l{l}"], raw[f"w_hh_l{l}"],
                             raw[f"b_l{l}"], hidden_dim, False)
        bwd = _ref_direction(layer_in, raw[f"w_ih_l{l}_rev"], raw[f"w_hh_l{l}_rev"],
                             raw[f"b_l{l}_rev"], hidden_dim, True)
        layer_in = jnp.concatenate([fwd, bwd], axis=-1)
    summed = fwd + bwd
    flat = jnp.transpose(summed, (1, 0, 2)).reshape(summed.shape[1], -1)
    return _maybe_squeeze(flat @ raw["fc_w"] + raw["fc_b"])


# ----------------------------------------------------------------------------
# Main
# ----------------------------------------------------------------------------
if __name__ == "__main__":
    VOCAB, EMB, HIDDEN, OUT = 50, 16, 32, 4
    N_LAYERS, MAX_LEN, BATCH = 2, 8, 2

    key = jax.random.PRNGKey(0)
    ks = iter(jax.random.split(key, 64))

    def uni(k, shape, bound):
        return jax.random.uniform(k, shape, jnp.float32, -bound, bound)

    stdv = 1.0 / (HIDDEN ** 0.5)
    raw = {"embedding": jax.random.normal(next(ks), (VOCAB, EMB), jnp.float32)}
    for l in range(N_LAYERS):
        in_dim = EMB if l == 0 else 2 * HIDDEN
        for suf in ("", "_rev"):
            raw[f"w_ih_l{l}{suf}"] = uni(next(ks), (in_dim, 4 * HIDDEN), stdv)
            raw[f"w_hh_l{l}{suf}"] = uni(next(ks), (HIDDEN, 4 * HIDDEN), stdv)
            # b_ih + b_hh folded into one bias, kept 2-D for TPU layout.
            raw[f"b_l{l}{suf}"] = uni(next(ks), (1, 4 * HIDDEN), 2 * stdv)
    fc_bound = 1.0 / ((HIDDEN * MAX_LEN) ** 0.5)
    raw["fc_w"] = uni(next(ks), (HIDDEN * MAX_LEN, OUT), fc_bound)
    raw["fc_b"] = uni(next(ks), (1, OUT), fc_bound)

    # One-time weight packing for the fused kernel (outside the jit hot path).
    packed = pack_lstm_params(raw, hidden_dim=HIDDEN, n_layers=N_LAYERS,
                              max_len=MAX_LEN)

    # Token input: (seq=MAX_LEN, batch) int32 ids (PyTorch time-major).
    x_tokens = jax.random.randint(next(ks), (MAX_LEN, BATCH), 0, VOCAB, jnp.int32)

    fwd_fn = jax.jit(functools.partial(lstm_model_forward,
                                       hidden_dim=HIDDEN, n_layers=N_LAYERS))
    out = jax.block_until_ready(fwd_fn(x_tokens, packed))

    ref = _ref_forward(x_tokens, raw, hidden_dim=HIDDEN, n_layers=N_LAYERS)
    assert out.shape == (BATCH, OUT), out.shape
    # bf16 matmul operands with f32 accumulation -> compare loosely vs f32 ref.
    assert jnp.allclose(out, ref, rtol=2e-2, atol=2e-2), \
        f"max abs diff {jnp.max(jnp.abs(out - ref))}"

    print("KERNEL_OK")
</pallas_src>

<mosaic_0001>
module attributes {stable_mosaic.version = 11 : i64} {
  func.func @_fused_lstm_kernel(%arg0: memref<32x1xi32, #tpu.memory_space<vmem>>, %arg1: memref<50x16xf32, #tpu.memory_space<vmem>>, %arg2: memref<32x256xbf16, #tpu.memory_space<vmem>>, %arg3: memref<64x256xbf16, #tpu.memory_space<vmem>>, %arg4: memref<1x256xf32, #tpu.memory_space<vmem>>, %arg5: memref<128x256xbf16, #tpu.memory_space<vmem>>, %arg6: memref<64x256xbf16, #tpu.memory_space<vmem>>, %arg7: memref<1x256xf32, #tpu.memory_space<vmem>>, %arg8: memref<512x4xbf16, #tpu.memory_space<vmem>>, %arg9: memref<1x4xf32, #tpu.memory_space<vmem>>, %arg10: memref<2x4xf32, #tpu.memory_space<vmem>>, %arg11: memref<16x128xf32, #tpu.memory_space<vmem>>) attributes {dimension_semantics = [], scalar_prefetch = 0 : i64, scratch_operands = 1 : i64, tpu.core_type = #tpu.core_type<tc>} {
    %c0 = arith.constant 0 : index
    %c0_0 = arith.constant 0 : index
    %0 = vector.load %arg0[%c0, %c0_0] : memref<32x1xi32, #tpu.memory_space<vmem>>, vector<32x1xi32>
    %1 = tpu.iota {dimensions = array<i32: 1>} : vector<32x50xi32>
    %2 = vector.broadcast %0 : vector<32x1xi32> to vector<32x50xi32>
    %3 = arith.cmpi eq, %1, %2 : vector<32x50xi32>
    %4 = arith.extui %3 : vector<32x50xi1> to vector<32x50xi32>
    %5 = arith.sitofp %4 : vector<32x50xi32> to vector<32x50xf32>
    %c0_1 = arith.constant 0 : index
    %c0_2 = arith.constant 0 : index
    %6 = vector.load %arg1[%c0_1, %c0_2] : memref<50x16xf32, #tpu.memory_space<vmem>>, vector<50x16xf32>
    %cst = arith.constant dense<0.000000e+00> : vector<32x16xf32>
    %7 = tpu.matmul %5, %6, %cst {dimension_numbers = #tpu.dot_dimension_numbers<[1], [0], [0], [1], [0, 0, 1, 1], [], []>} : vector<32x50xf32>, vector<50x16xf32>, vector<32x16xf32> -> vector<32x16xf32>
    %8 = vector.extract_strided_slice %7 {offsets = [0, 0], sizes = [16, 16], strides = [1, 1]} : vector<32x16xf32> to vector<16x16xf32>
    %9 = vector.extract_strided_slice %7 {offsets = [16, 0], sizes = [16, 16], strides = [1, 1]} : vector<32x16xf32> to vector<16x16xf32>
    %10 = tpu.concatenate %8, %9 in 1 : vector<16x16xf32>, vector<16x16xf32> -> vector<16x32xf32>
    %11 = arith.truncf %10 : vector<16x32xf32> to vector<16x32xbf16>
    %c0_3 = arith.constant 0 : index
    %c0_4 = arith.constant 0 : index
    %12 = vector.load %arg2[%c0_3, %c0_4] : memref<32x256xbf16, #tpu.memory_space<vmem>>, vector<32x256xbf16>
    %cst_5 = arith.constant dense<0.000000e+00> : vector<16x256xf32>
    %13 = tpu.matmul %11, %12, %cst_5 {dimension_numbers = #tpu.dot_dimension_numbers<[1], [0], [0], [1], [0, 0, 1, 1], [], []>} : vector<16x32xbf16>, vector<32x256xbf16>, vector<16x256xf32> -> vector<16x256xf32>
    %c0_6 = arith.constant 0 : index
    %c0_7 = arith.constant 0 : index
    %14 = vector.load %arg4[%c0_6, %c0_7] : memref<1x256xf32, #tpu.memory_space<vmem>>, vector<1x256xf32>
    %15 = vector.broadcast %14 : vector<1x256xf32> to vector<16x256xf32>
    %16 = arith.addf %13, %15 : vector<16x256xf32>
    %c0_8 = arith.constant 0 : index
    %c0_9 = arith.constant 0 : index
    %17 = vector.load %arg3[%c0_8, %c0_9] : memref<64x256xbf16, #tpu.memory_space<vmem>>, vector<64x256xbf16>
    %cst_10 = arith.constant 0.000000e+00 : f32
    %18 = vector.broadcast %cst_10 : f32 to vector<2x64xf32>
    %19 = vector.extract_strided_slice %16 {offsets = [0, 0], sizes = [2, 256], strides = [1, 1]} : vector<16x256xf32> to vector<2x256xf32>
    %20 = vector.extract_strided_slice %19 {offsets = [0, 0], sizes = [2, 192], strides = [1, 1]} : vector<2x256xf32> to vector<2x192xf32>
    %21 = arith.negf %20 : vector<2x192xf32>
    %22 = math.exp %21 : vector<2x192xf32>
    %cst_11 = arith.constant 1.000000e+00 : f32
    %23 = vector.broadcast %cst_11 : f32 to vector<2x192xf32>
    %24 = arith.addf %23, %22 : vector<2x192xf32>
    %25 = arith.divf %23, %24 : vector<2x192xf32>
    %26 = vector.extract_strided_slice %25 {offsets = [0, 0], sizes = [2, 64], strides = [1, 1]} : vector<2x192xf32> to vector<2x64xf32>
    %27 = vector.extract_strided_slice %25 {offsets = [0, 64], sizes = [2, 64], strides = [1, 1]} : vector<2x192xf32> to vector<2x64xf32>
    %28 = vector.extract_strided_slice %25 {offsets = [0, 128], sizes = [2, 64], strides = [1, 1]} : vector<2x192xf32> to vector<2x64xf32>
    %29 = vector.extract_strided_slice %19 {offsets = [0, 192], sizes = [2, 64], strides = [1, 1]} : vector<2x256xf32> to vector<2x64xf32>
    %30 = math.tanh %29 : vector<2x64xf32>
    %31 = arith.mulf %27, %18 : vector<2x64xf32>
    %32 = arith.mulf %26, %30 : vector<2x64xf32>
    %33 = arith.addf %31, %32 : vector<2x64xf32>
    %34 = math.tanh %33 : vector<2x64xf32>
    %35 = arith.mulf %28, %34 : vector<2x64xf32>
    %36 = vector.extract_strided_slice %16 {offsets = [2, 0], sizes = [2, 256], strides = [1, 1]} : vector<16x256xf32> to vector<2x256xf32>
    %37 = arith.truncf %35 : vector<2x64xf32> to vector<2x64xbf16>
    %cst_12 = arith.constant dense<0.000000e+00> : vector<2x256xf32>
    %38 = tpu.matmul %37, %17, %cst_12 {dimension_numbers = #tpu.dot_dimension_numbers<[1], [0], [0], [1], [0, 0, 1, 1], [], []>} : vector<2x64xbf16>, vector<64x256xbf16>, vector<2x256xf32> -> vector<2x256xf32>
    %39 = arith.addf %36, %38 : vector<2x256xf32>
    %40 = vector.extract_strided_slice %39 {offsets = [0, 0], sizes = [2, 192], strides = [1, 1]} : vector<2x256xf32> to vector<2x192xf32>
    %41 = arith.negf %40 : vector<2x192xf32>
    %42 = math.exp %41 : vector<2x192xf32>
    %cst_13 = arith.constant 1.000000e+00 : f32
    %43 = vector.broadcast %cst_13 : f32 to vector<2x192xf32>
    %44 = arith.addf %43, %42 : vector<2x192xf32>
    %45 = arith.divf %43, %44 : vector<2x192xf32>
    %46 = vector.extract_strided_slice %45 {offsets = [0, 0], sizes = [2, 64], strides = [1, 1]} : vector<2x192xf32> to vector<2x64xf32>
    %47 = vector.extract_strided_slice %45 {offsets = [0, 64], sizes = [2, 64], strides = [1, 1]} : vector<2x192xf32> to vector<2x64xf32>
    %48 = vector.extract_strided_slice %45 {offsets = [0, 128], sizes = [2, 64], strides = [1, 1]} : vector<2x192xf32> to vector<2x64xf32>
    %49 = vector.extract_strided_slice %39 {offsets = [0, 192], sizes = [2, 64], strides = [1, 1]} : vector<2x256xf32> to vector<2x64xf32>
    %50 = math.tanh %49 : vector<2x64xf32>
    %51 = arith.mulf %47, %33 : vector<2x64xf32>
    %52 = arith.mulf %46, %50 : vector<2x64xf32>
    %53 = arith.addf %51, %52 : vector<2x64xf32>
    %54 = math.tanh %53 : vector<2x64xf32>
    %55 = arith.mulf %48, %54 : vector<2x64xf32>
    %56 = vector.extract_strided_slice %16 {offsets = [4, 0], sizes = [2, 256], strides = [1, 1]} : vector<16x256xf32> to vector<2x256xf32>
    %57 = arith.truncf %55 : vector<2x64xf32> to vector<2x64xbf16>
    %cst_14 = arith.constant dense<0.000000e+00> : vector<2x256xf32>
    %58 = tpu.matmul %57, %17, %cst_14 {dimension_numbers = #tpu.dot_dimension_numbers<[1], [0], [0], [1], [0, 0, 1, 1], [], []>} : vector<2x64xbf16>, vector<64x256xbf16>, vector<2x256xf32> -> vector<2x256xf32>
    %59 = arith.addf %56, %58 : vector<2x256xf32>
    %60 = vector.extract_strided_slice %59 {offsets = [0, 0], sizes = [2, 192], strides = [1, 1]} : vector<2x256xf32> to vector<2x192xf32>
    %61 = arith.negf %60 : vector<2x192xf32>
    %62 = math.exp %61 : vector<2x192xf32>
    %cst_15 = arith.constant 1.000000e+00 : f32
    %63 = vector.broadcast %cst_15 : f32 to vector<2x192xf32>
    %64 = arith.addf %63, %62 : vector<2x192xf32>
    %65 = arith.divf %63, %64 : vector<2x192xf32>
    %66 = vector.extract_strided_slice %65 {offsets = [0, 0], sizes = [2, 64], strides = [1, 1]} : vector<2x192xf32> to vector<2x64xf32>
    %67 = vector.extract_strided_slice %65 {offsets = [0, 64], sizes = [2, 64], strides = [1, 1]} : vector<2x192xf32> to vector<2x64xf32>
    %68 = vector.extract_strided_slice %65 {offsets = [0, 128], sizes = [2, 64], strides = [1, 1]} : vector<2x192xf32> to vector<2x64xf32>
    %69 = vector.extract_strided_slice %59 {offsets = [0, 192], sizes = [2, 64], strides = [1, 1]} : vector<2x256xf32> to vector<2x64xf32>
    %70 = math.tanh %69 : vector<2x64xf32>
    %71 = arith.mulf %67, %53 : vector<2x64xf32>
    %72 = arith.mulf %66, %70 : vector<2x64xf32>
    %73 = arith.addf %71, %72 : vector<2x64xf32>
    %74 = math.tanh %73 : vector<2x64xf32>
    %75 = arith.mulf %68, %74 : vector<2x64xf32>
    %76 = vector.extract_strided_slice %16 {offsets = [6, 0], sizes = [2, 256], strides = [1, 1]} : vector<16x256xf32> to vector<2x256xf32>
    %77 = arith.truncf %75 : vector<2x64xf32> to vector<2x64xbf16>
    %cst_16 = arith.constant dense<0.000000e+00> : vector<2x256xf32>
    %78 = tpu.matmul %77, %17, %cst_16 {dimension_numbers = #tpu.dot_dimension_numbers<[1], [0], [0], [1], [0, 0, 1, 1], [], []>} : vector<2x64xbf16>, vector<64x256xbf16>, vector<2x256xf32> -> vector<2x256xf32>
    %79 = arith.addf %76, %78 : vector<2x256xf32>
    %80 = vector.extract_strided_slice %79 {offsets = [0, 0], sizes = [2, 192], strides = [1, 1]} : vector<2x256xf32> to vector<2x192xf32>
    %81 = arith.negf %80 : vector<2x192xf32>
    %82 = math.exp %81 : vector<2x192xf32>
    %cst_17 = arith.constant 1.000000e+00 : f32
    %83 = vector.broadcast %cst_17 : f32 to vector<2x192xf32>
    %84 = arith.addf %83, %82 : vector<2x192xf32>
    %85 = arith.divf %83, %84 : vector<2x192xf32>
    %86 = vector.extract_strided_slice %85 {offsets = [0, 0], sizes = [2, 64], strides = [1, 1]} : vector<2x192xf32> to vector<2x64xf32>
    %87 = vector.extract_strided_slice %85 {offsets = [0, 64], sizes = [2, 64], strides = [1, 1]} : vector<2x192xf32> to vector<2x64xf32>
    %88 = vector.extract_strided_slice %85 {offsets = [0, 128], sizes = [2, 64], strides = [1, 1]} : vector<2x192xf32> to vector<2x64xf32>
    %89 = vector.extract_strided_slice %79 {offsets = [0, 192], sizes = [2, 64], strides = [1, 1]} : vector<2x256xf32> to vector<2x64xf32>
    %90 = math.tanh %89 : vector<2x64xf32>
    %91 = arith.mulf %87, %73 : vector<2x64xf32>
    %92 = arith.mulf %86, %90 : vector<2x64xf32>
    %93 = arith.addf %91, %92 : vector<2x64xf32>
    %94 = math.tanh %93 : vector<2x64xf32>
    %95 = arith.mulf %88, %94 : vector<2x64xf32>
    %96 = vector.extract_strided_slice %16 {offsets = [8, 0], sizes = [2, 256], strides = [1, 1]} : vector<16x256xf32> to vector<2x256xf32>
    %97 = arith.truncf %95 : vector<2x64xf32> to vector<2x64xbf16>
    %cst_18 = arith.constant dense<0.000000e+00> : vector<2x256xf32>
    %98 = tpu.matmul %97, %17, %cst_18 {dimension_numbers = #tpu.dot_dimension_numbers<[1], [0], [0], [1], [0, 0, 1, 1], [], []>} : vector<2x64xbf16>, vector<64x256xbf16>, vector<2x256xf32> -> vector<2x256xf32>
    %99 = arith.addf %96, %98 : vector<2x256xf32>
    %100 = vector.extract_strided_slice %99 {offsets = [0, 0], sizes = [2, 192], strides = [1, 1]} : vector<2x256xf32> to vector<2x192xf32>
    %101 = arith.negf %100 : vector<2x192xf32>
    %102 = math.exp %101 : vector<2x192xf32>
    %cst_19 = arith.constant 1.000000e+00 : f32
    %103 = vector.broadcast %cst_19 : f32 to vector<2x192xf32>
    %104 = arith.addf %103, %102 : vector<2x192xf32>
    %105 = arith.divf %103, %104 : vector<2x192xf32>
    %106 = vector.extract_strided_slice %105 {offsets = [0, 0], sizes = [2, 64], strides = [1, 1]} : vector<2x192xf32> to vector<2x64xf32>
    %107 = vector.extract_strided_slice %105 {offsets = [0, 64], sizes = [2, 64], strides = [1, 1]} : vector<2x192xf32> to vector<2x64xf32>
    %108 = vector.extract_strided_slice %105 {offsets = [0, 128], sizes = [2, 64], strides = [1, 1]} : vector<2x192xf32> to vector<2x64xf32>
    %109 = vector.extract_strided_slice %99 {offsets = [0, 192], sizes = [2, 64], strides = [1, 1]} : vector<2x256xf32> to vector<2x64xf32>
    %110 = math.tanh %109 : vector<2x64xf32>
    %111 = arith.mulf %107, %93 : vector<2x64xf32>
    %112 = arith.mulf %106, %110 : vector<2x64xf32>
    %113 = arith.addf %111, %112 : vector<2x64xf32>
    %114 = math.tanh %113 : vector<2x64xf32>
    %115 = arith.mulf %108, %114 : vector<2x64xf32>
    %116 = vector.extract_strided_slice %16 {offsets = [10, 0], sizes = [2, 256], strides = [1, 1]} : vector<16x256xf32> to vector<2x256xf32>
    %117 = arith.truncf %115 : vector<2x64xf32> to vector<2x64xbf16>
    %cst_20 = arith.constant dense<0.000000e+00> : vector<2x256xf32>
    %118 = tpu.matmul %117, %17, %cst_20 {dimension_numbers = #tpu.dot_dimension_numbers<[1], [0], [0], [1], [0, 0, 1, 1], [], []>} : vector<2x64xbf16>, vector<64x256xbf16>, vector<2x256xf32> -> vector<2x256xf32>
    %119 = arith.addf %116, %118 : vector<2x256xf32>
    %120 = vector.extract_strided_slice %119 {offsets = [0, 0], sizes = [2, 192], strides = [1, 1]} : vector<2x256xf32> to vector<2x192xf32>
    %121 = arith.negf %120 : vector<2x192xf32>
    %122 = math.exp %121 : vector<2x192xf32>
    %cst_21 = arith.constant 1.000000e+00 : f32
    %123 = vector.broadcast %cst_21 : f32 to vector<2x192xf32>
    %124 = arith.addf %123, %122 : vector<2x192xf32>
    %125 = arith.divf %123, %124 : vector<2x192xf32>
    %126 = vector.extract_strided_slice %125 {offsets = [0, 0], sizes = [2, 64], strides = [1, 1]} : vector<2x192xf32> to vector<2x64xf32>
    %127 = vector.extract_strided_slice %125 {offsets = [0, 64], sizes = [2, 64], strides = [1, 1]} : vector<2x192xf32> to vector<2x64xf32>
    %128 = vector.extract_strided_slice %125 {offsets = [0, 128], sizes = [2, 64], strides = [1, 1]} : vector<2x192xf32> to vector<2x64xf32>
    %129 = vector.extract_strided_slice %119 {offsets = [0, 192], sizes = [2, 64], strides = [1, 1]} : vector<2x256xf32> to vector<2x64xf32>
    %130 = math.tanh %129 : vector<2x64xf32>
    %131 = arith.mulf %127, %113 : vector<2x64xf32>
    %132 = arith.mulf %126, %130 : vector<2x64xf32>
    %133 = arith.addf %131, %132 : vector<2x64xf32>
    %134 = math.tanh %133 : vector<2x64xf32>
    %135 = arith.mulf %128, %134 : vector<2x64xf32>
    %136 = vector.extract_strided_slice %16 {offsets = [12, 0], sizes = [2, 256], strides = [1, 1]} : vector<16x256xf32> to vector<2x256xf32>
    %137 = arith.truncf %135 : vector<2x64xf32> to vector<2x64xbf16>
    %cst_22 = arith.constant dense<0.000000e+00> : vector<2x256xf32>
    %138 = tpu.matmul %137, %17, %cst_22 {dimension_numbers = #tpu.dot_dimension_numbers<[1], [0], [0], [1], [0, 0, 1, 1], [], []>} : vector<2x64xbf16>, vector<64x256xbf16>, vector<2x256xf32> -> vector<2x256xf32>
    %139 = arith.addf %136, %138 : vector<2x256xf32>
    %140 = vector.extract_strided_slice %139 {offsets = [0, 0], sizes = [2, 192], strides = [1, 1]} : vector<2x256xf32> to vector<2x192xf32>
    %141 = arith.negf %140 : vector<2x192xf32>
    %142 = math.exp %141 : vector<2x192xf32>
    %cst_23 = arith.constant 1.000000e+00 : f32
    %143 = vector.broadcast %cst_23 : f32 to vector<2x192xf32>
    %144 = arith.addf %143, %142 : vector<2x192xf32>
    %145 = arith.divf %143, %144 : vector<2x192xf32>
    %146 = vector.extract_strided_slice %145 {offsets = [0, 0], sizes = [2, 64], strides = [1, 1]} : vector<2x192xf32> to vector<2x64xf32>
    %147 = vector.extract_strided_slice %145 {offsets = [0, 64], sizes = [2, 64], strides = [1, 1]} : vector<2x192xf32> to vector<2x64xf32>
    %148 = vector.extract_strided_slice %145 {offsets = [0, 128], sizes = [2, 64], strides = [1, 1]} : vector<2x192xf32> to vector<2x64xf32>
    %149 = vector.extract_strided_slice %139 {offsets = [0, 192], sizes = [2, 64], strides = [1, 1]} : vector<2x256xf32> to vector<2x64xf32>
    %150 = math.tanh %149 : vector<2x64xf32>
    %151 = arith.mulf %147, %133 : vector<2x64xf32>
    %152 = arith.mulf %146, %150 : vector<2x64xf32>
    %153 = arith.addf %151, %152 : vector<2x64xf32>
    %154 = math.tanh %153 : vector<2x64xf32>
    %155 = arith.mulf %148, %154 : vector<2x64xf32>
    %156 = vector.extract_strided_slice %16 {offsets = [14, 0], sizes = [2, 256], strides = [1, 1]} : vector<16x256xf32> to vector<2x256xf32>
    %157 = arith.truncf %155 : vector<2x64xf32> to vector<2x64xbf16>
    %cst_24 = arith.constant dense<0.000000e+00> : vector<2x256xf32>
    %158 = tpu.matmul %157, %17, %cst_24 {dimension_numbers = #tpu.dot_dimension_numbers<[1], [0], [0], [1], [0, 0, 1, 1], [], []>} : vector<2x64xbf16>, vector<64x256xbf16>, vector<2x256xf32> -> vector<2x256xf32>
    %159 = arith.addf %156, %158 : vector<2x256xf32>
    %160 = vector.extract_strided_slice %159 {offsets = [0, 0], sizes = [2, 192], strides = [1, 1]} : vector<2x256xf32> to vector<2x192xf32>
    %161 = arith.negf %160 : vector<2x192xf32>
    %162 = math.exp %161 : vector<2x192xf32>
    %cst_25 = arith.constant 1.000000e+00 : f32
    %163 = vector.broadcast %cst_25 : f32 to vector<2x192xf32>
    %164 = arith.addf %163, %162 : vector<2x192xf32>
    %165 = arith.divf %163, %164 : vector<2x192xf32>
    %166 = vector.extract_strided_slice %165 {offsets = [0, 0], sizes = [2, 64], strides = [1, 1]} : vector<2x192xf32> to vector<2x64xf32>
    %167 = vector.extract_strided_slice %165 {offsets = [0, 64], sizes = [2, 64], strides = [1, 1]} : vector<2x192xf32> to vector<2x64xf32>
    %168 = vector.extract_strided_slice %165 {offsets = [0, 128], sizes = [2, 64], strides = [1, 1]} : vector<2x192xf32> to vector<2x64xf32>
    %169 = vector.extract_strided_slice %159 {offsets = [0, 192], sizes = [2, 64], strides = [1, 1]} : vector<2x256xf32> to vector<2x64xf32>
    %170 = math.tanh %169 : vector<2x64xf32>
    %171 = arith.mulf %167, %153 : vector<2x64xf32>
    %172 = arith.mulf %166, %170 : vector<2x64xf32>
    %173 = arith.addf %171, %172 : vector<2x64xf32>
    %174 = math.tanh %173 : vector<2x64xf32>
    %175 = arith.mulf %168, %174 : vector<2x64xf32>
    %176 = tpu.concatenate %35, %175 in 1 : vector<2x64xf32>, vector<2x64xf32> -> vector<2x128xf32>
    %c0_26 = arith.constant 0 : index
    %c0_27 = arith.constant 0 : index
    %177 = vector.load %arg11[%c0_26, %c0_27] : memref<16x128xf32, #tpu.memory_space<vmem>>, vector<2x128xf32>
    tpu.vector_store %arg11[%c0_26, %c0_27], %176 {strides = array<i32>} : memref<16x128xf32, #tpu.memory_space<vmem>>, vector<2x128xf32>,
    %178 = tpu.concatenate %55, %155 in 1 : vector<2x64xf32>, vector<2x64xf32> -> vector<2x128xf32>
    %c2 = arith.constant 2 : index
    %c0_28 = arith.constant 0 : index
    %179 = vector.load %arg11[%c2, %c0_28] : memref<16x128xf32, #tpu.memory_space<vmem>>, vector<2x128xf32>
    tpu.vector_store %arg11[%c2, %c0_28], %178 {strides = array<i32>} : memref<16x128xf32, #tpu.memory_space<vmem>>, vector<2x128xf32>,
    %180 = tpu.concatenate %75, %135 in 1 : vector<2x64xf32>, vector<2x64xf32> -> vector<2x128xf32>
    %c4 = arith.constant 4 : index
    %c0_29 = arith.constant 0 : index
    %181 = vector.load %arg11[%c4, %c0_29] : memref<16x128xf32, #tpu.memory_space<vmem>>, vector<2x128xf32>
    tpu.vector_store %arg11[%c4, %c0_29], %180 {strides = array<i32>} : memref<16x128xf32, #tpu.memory_space<vmem>>, vector<2x128xf32>,
    %182 = tpu.concatenate %95, %115 in 1 : vector<2x64xf32>, vector<2x64xf32> -> vector<2x128xf32>
    %c6 = arith.constant 6 : index
    %c0_30 = arith.constant 0 : index
    %183 = vector.load %arg11[%c6, %c0_30] : memref<16x128xf32, #tpu.memory_space<vmem>>, vector<2x128xf32>
    tpu.vector_store %arg11[%c6, %c0_30], %182 {strides = array<i32>} : memref<16x128xf32, #tpu.memory_space<vmem>>, vector<2x128xf32>,
    %184 = tpu.concatenate %115, %95 in 1 : vector<2x64xf32>, vector<2x64xf32> -> vector<2x128xf32>
    %c8 = arith.constant 8 : index
    %c0_31 = arith.constant 0 : index
    %185 = vector.load %arg11[%c8, %c0_31] : memref<16x128xf32, #tpu.memory_space<vmem>>, vector<2x128xf32>
    tpu.vector_store %arg11[%c8, %c0_31], %184 {strides = array<i32>} : memref<16x128xf32, #tpu.memory_space<vmem>>, vector<2x128xf32>,
    %186 = tpu.concatenate %135, %75 in 1 : vector<2x64xf32>, vector<2x64xf32> -> vector<2x128xf32>
    %c10 = arith.constant 10 : index
    %c0_32 = arith.constant 0 : index
    %187 = vector.load %arg11[%c10, %c0_32] : memref<16x128xf32, #tpu.memory_space<vmem>>, vector<2x128xf32>
    tpu.vector_store %arg11[%c10, %c0_32], %186 {strides = array<i32>} : memref<16x128xf32, #tpu.memory_space<vmem>>, vector<2x128xf32>,
    %188 = tpu.concatenate %155, %55 in 1 : vector<2x64xf32>, vector<2x64xf32> -> vector<2x128xf32>
    %c12 = arith.constant 12 : index
    %c0_33 = arith.constant 0 : index
    %189 = vector.load %arg11[%c12, %c0_33] : memref<16x128xf32, #tpu.memory_space<vmem>>, vector<2x128xf32>
    tpu.vector_store %arg11[%c12, %c0_33], %188 {strides = array<i32>} : memref<16x128xf32, #tpu.memory_space<vmem>>, vector<2x128xf32>,
    %190 = tpu.concatenate %175, %35 in 1 : vector<2x64xf32>, vector<2x64xf32> -> vector<2x128xf32>
    %c14 = arith.constant 14 : index
    %c0_34 = arith.constant 0 : index
    %191 = vector.load %arg11[%c14, %c0_34] : memref<16x128xf32, #tpu.memory_space<vmem>>, vector<2x128xf32>
    tpu.vector_store %arg11[%c14, %c0_34], %190 {strides = array<i32>} : memref<16x128xf32, #tpu.memory_space<vmem>>, vector<2x128xf32>,
    %c0_35 = arith.constant 0 : index
    %c0_36 = arith.constant 0 : index
    %192 = vector.load %arg11[%c0_35, %c0_36] : memref<16x128xf32, #tpu.memory_space<vmem>>, vector<16x128xf32>
    %193 = arith.truncf %192 : vector<16x128xf32> to vector<16x128xbf16>
    %c0_37 = arith.constant 0 : index
    %c0_38 = arith.constant 0 : index
    %194 = vector.load %arg5[%c0_37, %c0_38] : memref<128x256xbf16, #tpu.memory_space<vmem>>, vector<128x256xbf16>
    %cst_39 = arith.constant dense<0.000000e+00> : vector<16x256xf32>
    %195 = tpu.matmul %193, %194, %cst_39 {dimension_numbers = #tpu.dot_dimension_numbers<[1], [0], [0], [1], [0, 0, 1, 1], [], []>} : vector<16x128xbf16>, vector<128x256xbf16>, vector<16x256xf32> -> vector<16x256xf32>
    %c0_40 = arith.constant 0 : index
    %c0_41 = arith.constant 0 : index
    %196 = vector.load %arg7[%c0_40, %c0_41] : memref<1x256xf32, #tpu.memory_space<vmem>>, vector<1x256xf32>
    %197 = vector.broadcast %196 : vector<1x256xf32> to vector<16x256xf32>
    %198 = arith.addf %195, %197 : vector<16x256xf32>
    %c0_42 = arith.constant 0 : index
    %c0_43 = arith.constant 0 : index
    %199 = vector.load %arg6[%c0_42, %c0_43] : memref<64x256xbf16, #tpu.memory_space<vmem>>, vector<64x256xbf16>
    %cst_44 = arith.constant 0.000000e+00 : f32
    %200 = vector.broadcast %cst_44 : f32 to vector<2x64xf32>
    %201 = vector.extract_strided_slice %198 {offsets = [0, 0], sizes = [2, 256], strides = [1, 1]} : vector<16x256xf32> to vector<2x256xf32>
    %202 = vector.extract_strided_slice %201 {offsets = [0, 0], sizes = [2, 192], strides = [1, 1]} : vector<2x256xf32> to vector<2x192xf32>
    %203 = arith.negf %202 : vector<2x192xf32>
    %204 = math.exp %203 : vector<2x192xf32>
    %cst_45 = arith.constant 1.000000e+00 : f32
    %205 = vector.broadcast %cst_45 : f32 to vector<2x192xf32>
    %206 = arith.addf %205, %204 : vector<2x192xf32>
    %207 = arith.divf %205, %206 : vector<2x192xf32>
    %208 = vector.extract_strided_slice %207 {offsets = [0, 0], sizes = [2, 64], strides = [1, 1]} : vector<2x192xf32> to vector<2x64xf32>
    %209 = vector.extract_strided_slice %207 {offsets = [0, 64], sizes = [2, 64], strides = [1, 1]} : vector<2x192xf32> to vector<2x64xf32>
    %210 = vector.extract_strided_slice %207 {offsets = [0, 128], sizes = [2, 64], strides = [1, 1]} : vector<2x192xf32> to vector<2x64xf32>
    %211 = vector.extract_strided_slice %201 {offsets = [0, 192], sizes = [2, 64], strides = [1, 1]} : vector<2x256xf32> to vector<2x64xf32>
    %212 = math.tanh %211 : vector<2x64xf32>
    %213 = arith.mulf %209, %200 : vector<2x64xf32>
    %214 = arith.mulf %208, %212 : vector<2x64xf32>
    %215 = arith.addf %213, %214 : vector<2x64xf32>
    %216 = math.tanh %215 : vector<2x64xf32>
    %217 = arith.mulf %210, %216 : vector<2x64xf32>
    %218 = vector.extract_strided_slice %198 {offsets = [2, 0], sizes = [2, 256], strides = [1, 1]} : vector<16x256xf32> to vector<2x256xf32>
    %219 = arith.truncf %217 : vector<2x64xf32> to vector<2x64xbf16>
    %cst_46 = arith.constant dense<0.000000e+00> : vector<2x256xf32>
    %220 = tpu.matmul %219, %199, %cst_46 {dimension_numbers = #tpu.dot_dimension_numbers<[1], [0], [0], [1], [0, 0, 1, 1], [], []>} : vector<2x64xbf16>, vector<64x256xbf16>, vector<2x256xf32> -> vector<2x256xf32>
    %221 = arith.addf %218, %220 : vector<2x256xf32>
    %222 = vector.extract_strided_slice %221 {offsets = [0, 0], sizes = [2, 192], strides = [1, 1]} : vector<2x256xf32> to vector<2x192xf32>
    %223 = arith.negf %222 : vector<2x192xf32>
    %224 = math.exp %223 : vector<2x192xf32>
    %cst_47 = arith.constant 1.000000e+00 : f32
    %225 = vector.broadcast %cst_47 : f32 to vector<2x192xf32>
    %226 = arith.addf %225, %224 : vector<2x192xf32>
    %227 = arith.divf %225, %226 : vector<2x192xf32>
    %228 = vector.extract_strided_slice %227 {offsets = [0, 0], sizes = [2, 64], strides = [1, 1]} : vector<2x192xf32> to vector<2x64xf32>
    %229 = vector.extract_strided_slice %227 {offsets = [0, 64], sizes = [2, 64], strides = [1, 1]} : vector<2x192xf32> to vector<2x64xf32>
    %230 = vector.extract_strided_slice %227 {offsets = [0, 128], sizes = [2, 64], strides = [1, 1]} : vector<2x192xf32> to vector<2x64xf32>
    %231 = vector.extract_strided_slice %221 {offsets = [0, 192], sizes = [2, 64], strides = [1, 1]} : vector<2x256xf32> to vector<2x64xf32>
    %232 = math.tanh %231 : vector<2x64xf32>
    %233 = arith.mulf %229, %215 : vector<2x64xf32>
    %234 = arith.mulf %228, %232 : vector<2x64xf32>
    %235 = arith.addf %233, %234 : vector<2x64xf32>
    %236 = math.tanh %235 : vector<2x64xf32>
    %237 = arith.mulf %230, %236 : vector<2x64xf32>
    %238 = vector.extract_strided_slice %198 {offsets = [4, 0], sizes = [2, 256], strides = [1, 1]} : vector<16x256xf32> to vector<2x256xf32>
    %239 = arith.truncf %237 : vector<2x64xf32> to vector<2x64xbf16>
    %cst_48 = arith.constant dense<0.000000e+00> : vector<2x256xf32>
    %240 = tpu.matmul %239, %199, %cst_48 {dimension_numbers = #tpu.dot_dimension_numbers<[1], [0], [0], [1], [0, 0, 1, 1], [], []>} : vector<2x64xbf16>, vector<64x256xbf16>, vector<2x256xf32> -> vector<2x256xf32>
    %241 = arith.addf %238, %240 : vector<2x256xf32>
    %242 = vector.extract_strided_slice %241 {offsets = [0, 0], sizes = [2, 192], strides = [1, 1]} : vector<2x256xf32> to vector<2x192xf32>
    %243 = arith.negf %242 : vector<2x192xf32>
    %244 = math.exp %243 : vector<2x192xf32>
    %cst_49 = arith.constant 1.000000e+00 : f32
    %245 = vector.broadcast %cst_49 : f32 to vector<2x192xf32>
    %246 = arith.addf %245, %244 : vector<2x192xf32>
    %247 = arith.divf %245, %246 : vector<2x192xf32>
    %248 = vector.extract_strided_slice %247 {offsets = [0, 0], sizes = [2, 64], strides = [1, 1]} : vector<2x192xf32> to vector<2x64xf32>
    %249 = vector.extract_strided_slice %247 {offsets = [0, 64], sizes = [2, 64], strides = [1, 1]} : vector<2x192xf32> to vector<2x64xf32>
    %250 = vector.extract_strided_slice %247 {offsets = [0, 128], sizes = [2, 64], strides = [1, 1]} : vector<2x192xf32> to vector<2x64xf32>
    %251 = vector.extract_strided_slice %241 {offsets = [0, 192], sizes = [2, 64], strides = [1, 1]} : vector<2x256xf32> to vector<2x64xf32>
    %252 = math.tanh %251 : vector<2x64xf32>
    %253 = arith.mulf %249, %235 : vector<2x64xf32>
    %254 = arith.mulf %248, %252 : vector<2x64xf32>
    %255 = arith.addf %253, %254 : vector<2x64xf32>
    %256 = math.tanh %255 : vector<2x64xf32>
    %257 = arith.mulf %250, %256 : vector<2x64xf32>
    %258 = vector.extract_strided_slice %198 {offsets = [6, 0], sizes = [2, 256], strides = [1, 1]} : vector<16x256xf32> to vector<2x256xf32>
    %259 = arith.truncf %257 : vector<2x64xf32> to vector<2x64xbf16>
    %cst_50 = arith.constant dense<0.000000e+00> : vector<2x256xf32>
    %260 = tpu.matmul %259, %199, %cst_50 {dimension_numbers = #tpu.dot_dimension_numbers<[1], [0], [0], [1], [0, 0, 1, 1], [], []>} : vector<2x64xbf16>, vector<64x256xbf16>, vector<2x256xf32> -> vector<2x256xf32>
    %261 = arith.addf %258, %260 : vector<2x256xf32>
    %262 = vector.extract_strided_slice %261 {offsets = [0, 0], sizes = [2, 192], strides = [1, 1]} : vector<2x256xf32> to vector<2x192xf32>
    %263 = arith.negf %262 : vector<2x192xf32>
    %264 = math.exp %263 : vector<2x192xf32>
    %cst_51 = arith.constant 1.000000e+00 : f32
    %265 = vector.broadcast %cst_51 : f32 to vector<2x192xf32>
    %266 = arith.addf %265, %264 : vector<2x192xf32>
    %267 = arith.divf %265, %266 : vector<2x192xf32>
    %268 = vector.extract_strided_slice %267 {offsets = [0, 0], sizes = [2, 64], strides = [1, 1]} : vector<2x192xf32> to vector<2x64xf32>
    %269 = vector.extract_strided_slice %267 {offsets = [0, 64], sizes = [2, 64], strides = [1, 1]} : vector<2x192xf32> to vector<2x64xf32>
    %270 = vector.extract_strided_slice %267 {offsets = [0, 128], sizes = [2, 64], strides = [1, 1]} : vector<2x192xf32> to vector<2x64xf32>
    %271 = vector.extract_strided_slice %261 {offsets = [0, 192], sizes = [2, 64], strides = [1, 1]} : vector<2x256xf32> to vector<2x64xf32>
    %272 = math.tanh %271 : vector<2x64xf32>
    %273 = arith.mulf %269, %255 : vector<2x64xf32>
    %274 = arith.mulf %268, %272 : vector<2x64xf32>
    %275 = arith.addf %273, %274 : vector<2x64xf32>
    %276 = math.tanh %275 : vector<2x64xf32>
    %277 = arith.mulf %270, %276 : vector<2x64xf32>
    %278 = vector.extract_strided_slice %198 {offsets = [8, 0], sizes = [2, 256], strides = [1, 1]} : vector<16x256xf32> to vector<2x256xf32>
    %279 = arith.truncf %277 : vector<2x64xf32> to vector<2x64xbf16>
    %cst_52 = arith.constant dense<0.000000e+00> : vector<2x256xf32>
    %280 = tpu.matmul %279, %199, %cst_52 {dimension_numbers = #tpu.dot_dimension_numbers<[1], [0], [0], [1], [0, 0, 1, 1], [], []>} : vector<2x64xbf16>, vector<64x256xbf16>, vector<2x256xf32> -> vector<2x256xf32>
    %281 = arith.addf %278, %280 : vector<2x256xf32>
    %282 = vector.extract_strided_slice %281 {offsets = [0, 0], sizes = [2, 192], strides = [1, 1]} : vector<2x256xf32> to vector<2x192xf32>
    %283 = arith.negf %282 : vector<2x192xf32>
    %284 = math.exp %283 : vector<2x192xf32>
    %cst_53 = arith.constant 1.000000e+00 : f32
    %285 = vector.broadcast %cst_53 : f32 to vector<2x192xf32>
    %286 = arith.addf %285, %284 : vector<2x192xf32>
    %287 = arith.divf %285, %286 : vector<2x192xf32>
    %288 = vector.extract_strided_slice %287 {offsets = [0, 0], sizes = [2, 64], strides = [1, 1]} : vector<2x192xf32> to vector<2x64xf32>
    %289 = vector.extract_strided_slice %287 {offsets = [0, 64], sizes = [2, 64], strides = [1, 1]} : vector<2x192xf32> to vector<2x64xf32>
    %290 = vector.extract_strided_slice %287 {offsets = [0, 128], sizes = [2, 64], strides = [1, 1]} : vector<2x192xf32> to vector<2x64xf32>
    %291 = vector.extract_strided_slice %281 {offsets = [0, 192], sizes = [2, 64], strides = [1, 1]} : vector<2x256xf32> to vector<2x64xf32>
    %292 = math.tanh %291 : vector<2x64xf32>
    %293 = arith.mulf %289, %275 : vector<2x64xf32>
    %294 = arith.mulf %288, %292 : vector<2x64xf32>
    %295 = arith.addf %293, %294 : vector<2x64xf32>
    %296 = math.tanh %295 : vector<2x64xf32>
    %297 = arith.mulf %290, %296 : vector<2x64xf32>
    %298 = vector.extract_strided_slice %198 {offsets = [10, 0], sizes = [2, 256], strides = [1, 1]} : vector<16x256xf32> to vector<2x256xf32>
    %299 = arith.truncf %297 : vector<2x64xf32> to vector<2x64xbf16>
    %cst_54 = arith.constant dense<0.000000e+00> : vector<2x256xf32>
    %300 = tpu.matmul %299, %199, %cst_54 {dimension_numbers = #tpu.dot_dimension_numbers<[1], [0], [0], [1], [0, 0, 1, 1], [], []>} : vector<2x64xbf16>, vector<64x256xbf16>, vector<2x256xf32> -> vector<2x256xf32>
    %301 = arith.addf %298, %300 : vector<2x256xf32>
    %302 = vector.extract_strided_slice %301 {offsets = [0, 0], sizes = [2, 192], strides = [1, 1]} : vector<2x256xf32> to vector<2x192xf32>
    %303 = arith.negf %302 : vector<2x192xf32>
    %304 = math.exp %303 : vector<2x192xf32>
    %cst_55 = arith.constant 1.000000e+00 : f32
    %305 = vector.broadcast %cst_55 : f32 to vector<2x192xf32>
    %306 = arith.addf %305, %304 : vector<2x192xf32>
    %307 = arith.divf %305, %306 : vector<2x192xf32>
    %308 = vector.extract_strided_slice %307 {offsets = [0, 0], sizes = [2, 64], strides = [1, 1]} : vector<2x192xf32> to vector<2x64xf32>
    %309 = vector.extract_strided_slice %307 {offsets = [0, 64], sizes = [2, 64], strides = [1, 1]} : vector<2x192xf32> to vector<2x64xf32>
    %310 = vector.extract_strided_slice %307 {offsets = [0, 128], sizes = [2, 64], strides = [1, 1]} : vector<2x192xf32> to vector<2x64xf32>
    %311 = vector.extract_strided_slice %301 {offsets = [0, 192], sizes = [2, 64], strides = [1, 1]} : vector<2x256xf32> to vector<2x64xf32>
    %312 = math.tanh %311 : vector<2x64xf32>
    %313 = arith.mulf %309, %295 : vector<2x64xf32>
    %314 = arith.mulf %308, %312 : vector<2x64xf32>
    %315 = arith.addf %313, %314 : vector<2x64xf32>
    %316 = math.tanh %315 : vector<2x64xf32>
    %317 = arith.mulf %310, %316 : vector<2x64xf32>
    %318 = vector.extract_strided_slice %198 {offsets = [12, 0], sizes = [2, 256], strides = [1, 1]} : vector<16x256xf32> to vector<2x256xf32>
    %319 = arith.truncf %317 : vector<2x64xf32> to vector<2x64xbf16>
    %cst_56 = arith.constant dense<0.000000e+00> : vector<2x256xf32>
    %320 = tpu.matmul %319, %199, %cst_56 {dimension_numbers = #tpu.dot_dimension_numbers<[1], [0], [0], [1], [0, 0, 1, 1], [], []>} : vector<2x64xbf16>, vector<64x256xbf16>, vector<2x256xf32> -> vector<2x256xf32>
    %321 = arith.addf %318, %320 : vector<2x256xf32>
    %322 = vector.extract_strided_slice %321 {offsets = [0, 0], sizes = [2, 192], strides = [1, 1]} : vector<2x256xf32> to vector<2x192xf32>
    %323 = arith.negf %322 : vector<2x192xf32>
    %324 = math.exp %323 : vector<2x192xf32>
    %cst_57 = arith.constant 1.000000e+00 : f32
    %325 = vector.broadcast %cst_57 : f32 to vector<2x192xf32>
    %326 = arith.addf %325, %324 : vector<2x192xf32>
    %327 = arith.divf %325, %326 : vector<2x192xf32>
    %328 = vector.extract_strided_slice %327 {offsets = [0, 0], sizes = [2, 64], strides = [1, 1]} : vector<2x192xf32> to vector<2x64xf32>
    %329 = vector.extract_strided_slice %327 {offsets = [0, 64], sizes = [2, 64], strides = [1, 1]} : vector<2x192xf32> to vector<2x64xf32>
    %330 = vector.extract_strided_slice %327 {offsets = [0, 128], sizes = [2, 64], strides = [1, 1]} : vector<2x192xf32> to vector<2x64xf32>
    %331 = vector.extract_strided_slice %321 {offsets = [0, 192], sizes = [2, 64], strides = [1, 1]} : vector<2x256xf32> to vector<2x64xf32>
    %332 = math.tanh %331 : vector<2x64xf32>
    %333 = arith.mulf %329, %315 : vector<2x64xf32>
    %334 = arith.mulf %328, %332 : vector<2x64xf32>
    %335 = arith.addf %333, %334 : vector<2x64xf32>
    %336 = math.tanh %335 : vector<2x64xf32>
    %337 = arith.mulf %330, %336 : vector<2x64xf32>
    %338 = vector.extract_strided_slice %198 {offsets = [14, 0], sizes = [2, 256], strides = [1, 1]} : vector<16x256xf32> to vector<2x256xf32>
    %339 = arith.truncf %337 : vector<2x64xf32> to vector<2x64xbf16>
    %cst_58 = arith.constant dense<0.000000e+00> : vector<2x256xf32>
    %340 = tpu.matmul %339, %199, %cst_58 {dimension_numbers = #tpu.dot_dimension_numbers<[1], [0], [0], [1], [0, 0, 1, 1], [], []>} : vector<2x64xbf16>, vector<64x256xbf16>, vector<2x256xf32> -> vector<2x256xf32>
    %341 = arith.addf %338, %340 : vector<2x256xf32>
    %342 = vector.extract_strided_slice %341 {offsets = [0, 0], sizes = [2, 192], strides = [1, 1]} : vector<2x256xf32> to vector<2x192xf32>
    %343 = arith.negf %342 : vector<2x192xf32>
    %344 = math.exp %343 : vector<2x192xf32>
    %cst_59 = arith.constant 1.000000e+00 : f32
    %345 = vector.broadcast %cst_59 : f32 to vector<2x192xf32>
    %346 = arith.addf %345, %344 : vector<2x192xf32>
    %347 = arith.divf %345, %346 : vector<2x192xf32>
    %348 = vector.extract_strided_slice %347 {offsets = [0, 0], sizes = [2, 64], strides = [1, 1]} : vector<2x192xf32> to vector<2x64xf32>
    %349 = vector.extract_strided_slice %347 {offsets = [0, 64], sizes = [2, 64], strides = [1, 1]} : vector<2x192xf32> to vector<2x64xf32>
    %350 = vector.extract_strided_slice %347 {offsets = [0, 128], sizes = [2, 64], strides = [1, 1]} : vector<2x192xf32> to vector<2x64xf32>
    %351 = vector.extract_strided_slice %341 {offsets = [0, 192], sizes = [2, 64], strides = [1, 1]} : vector<2x256xf32> to vector<2x64xf32>
    %352 = math.tanh %351 : vector<2x64xf32>
    %353 = arith.mulf %349, %335 : vector<2x64xf32>
    %354 = arith.mulf %348, %352 : vector<2x64xf32>
    %355 = arith.addf %353, %354 : vector<2x64xf32>
    %356 = math.tanh %355 : vector<2x64xf32>
    %357 = arith.mulf %350, %356 : vector<2x64xf32>
    %358 = tpu.concatenate %217, %237, %257, %277, %297, %317, %337, %357 in 1 : vector<2x64xf32>, vector<2x64xf32>, vector<2x64xf32>, vector<2x64xf32>, vector<2x64xf32>, vector<2x64xf32>, vector<2x64xf32>, vector<2x64xf32> -> vector<2x512xf32>
    %359 = arith.truncf %358 : vector<2x512xf32> to vector<2x512xbf16>
    %c0_60 = arith.constant 0 : index
    %c0_61 = arith.constant 0 : index
    %360 = vector.load %arg8[%c0_60, %c0_61] : memref<512x4xbf16, #tpu.memory_space<vmem>>, vector<512x4xbf16>
    %cst_62 = arith.constant dense<0.000000e+00> : vector<2x4xf32>
    %361 = tpu.matmul %359, %360, %cst_62 {dimension_numbers = #tpu.dot_dimension_numbers<[1], [0], [0], [1], [0, 0, 1, 1], [], []>} : vector<2x512xbf16>, vector<512x4xbf16>, vector<2x4xf32> -> vector<2x4xf32>
    %c0_63 = arith.constant 0 : index
    %c0_64 = arith.constant 0 : index
    %362 = vector.load %arg9[%c0_63, %c0_64] : memref<1x4xf32, #tpu.memory_space<vmem>>, vector<1x4xf32>
    %363 = vector.broadcast %362 : vector<1x4xf32> to vector<2x4xf32>
    %364 = arith.addf %361, %363 : vector<2x4xf32>
    %c0_65 = arith.constant 0 : index
    %c0_66 = arith.constant 0 : index
    %365 = vector.load %arg10[%c0_65, %c0_66] : memref<2x4xf32, #tpu.memory_space<vmem>>, vector<2x4xf32>
    tpu.vector_store %arg10[%c0_65, %c0_66], %364 {strides = array<i32>} : memref<2x4xf32, #tpu.memory_space<vmem>>, vector<2x4xf32>,
    return
  }
}

</mosaic_0001>

<llo_original>
// kernel: lstm_model_forward.1
$region0: #{lstm_model_forward.1}
  #allocation0 [shape = 'u32[]', space=smem, size = 0x4, offset = 0x4, fixed_abs, tag = 'smem constant byte address 0x4 - core index']
  #allocation1 [shape = 'u32[144,128]{1,0:T(1,128)}', space=vmem, size = 0x12000, scoped, tag = 'internal scratch']
  #allocation2 [shape = 'f32[16,128]{1,0:T(8,128)}', space=vmem, size = 0x2000, scoped, tag = 'scratch operand']
  %s0 = inlined_call_operand.vmem [shape: s32[32,1], index: 0, kind: input, shape index: {}]
  %s1 = inlined_call_operand.vmem [shape: f32[50,16], index: 1, kind: input, shape index: {}]
  %s2 = inlined_call_operand.vmem [shape: bf16[32,256], index: 2, kind: input, shape index: {}]
  %s3 = inlined_call_operand.vmem [shape: bf16[64,256], index: 3, kind: input, shape index: {}]
  %s4 = inlined_call_operand.vmem [shape: f32[1,256], index: 4, kind: input, shape index: {}]
  %s5 = inlined_call_operand.vmem [shape: bf16[128,256], index: 5, kind: input, shape index: {}]
  %s6 = inlined_call_operand.vmem [shape: bf16[64,256], index: 6, kind: input, shape index: {}]
  %s7 = inlined_call_operand.vmem [shape: f32[1,256], index: 7, kind: input, shape index: {}]
  %s8 = inlined_call_operand.vmem [shape: bf16[512,4], index: 8, kind: input, shape index: {}]
  %s9 = inlined_call_operand.vmem [shape: f32[1,4], index: 9, kind: input, shape index: {}]
  %s10 = inlined_call_operand.hbm [shape: f32[2,4], index: 10, kind: output, shape index: {}]
  %s11 = sld [smem:[#allocation0]]
  $region50: #{lstm_model_forward.1} parent=0
    _
  %s13 = ssub.s32 1, %s11
  %s14 = scalar_select 0, %s13, %s11
  $region1: #{lstm_model_forward.1} parent=0
    #allocation3 [shape = 'u8[1024]{0}', space=vmem, size = 0x400, scoped, tag = 'output window, operand 0, single buffered']
    #allocation4 [shape = 's32[1]{0}', space=sflag, size = 0x4, scoped, tag = 'scoped memory for lstm_model_forward.1']
    %15 = vsyncpa [#allocation4], 0
    // Predicated region
    $region2: #{lstm_model_forward.1} parent=1 // pred_check
      _
    $region3: #{lstm_model_forward.1} parent=1 // pred_check_branch
      %17 = sbr.rel (0) target = $region5
    $region4: #{lstm_model_forward.1} parent=1 // pred_region
      _
    $region5: #{lstm_model_forward.1} parent=1 // pred_fallthru
      _
    // Predicated region
    $region6: #{lstm_model_forward.1} parent=1 // pred_check
      _
    $region7: #{lstm_model_forward.1} parent=1 // pred_check_branch
      %19 = sbr.rel (0) target = $region9
    $region8: #{lstm_model_forward.1} parent=1 // pred_region
      _
    $region9: #{lstm_model_forward.1} parent=1 // pred_fallthru
      _
    // Predicated region
    $region10: #{lstm_model_forward.1} parent=1 // pred_check
      _
    $region11: #{lstm_model_forward.1} parent=1 // pred_check_branch
      %21 = sbr.rel (0) target = $region13
    $region12: #{lstm_model_forward.1} parent=1 // pred_region
      _
    $region13: #{lstm_model_forward.1} parent=1 // pred_fallthru
      _
    // Predicated region
    $region14: #{lstm_model_forward.1} parent=1 // pred_check
      _
    $region15: #{lstm_model_forward.1} parent=1 // pred_check_branch
      %23 = sbr.rel (0) target = $region17
    $region16: #{lstm_model_forward.1} parent=1 // pred_region
      _
    $region17: #{lstm_model_forward.1} parent=1 // pred_fallthru
      _
    // Predicated region
    $region18: #{lstm_model_forward.1} parent=1 // pred_check
      _
    $region19: #{lstm_model_forward.1} parent=1 // pred_check_branch
      %25 = sbr.rel (0) target = $region21
    $region20: #{lstm_model_forward.1} parent=1 // pred_region
      _
    $region21: #{lstm_model_forward.1} parent=1 // pred_fallthru
      _
    // Predicated region
    $region22: #{lstm_model_forward.1} parent=1 // pred_check
      _
    $region23: #{lstm_model_forward.1} parent=1 // pred_check_branch
      %27 = sbr.rel (0) target = $region25
    $region24: #{lstm_model_forward.1} parent=1 // pred_region
      _
    $region25: #{lstm_model_forward.1} parent=1 // pred_fallthru
      _
    // Predicated region
    $region26: #{lstm_model_forward.1} parent=1 // pred_check
      _
    $region27: #{lstm_model_forward.1} parent=1 // pred_check_branch
      %29 = sbr.rel (0) target = $region29
    $region28: #{lstm_model_forward.1} parent=1 // pred_region
      _
    $region29: #{lstm_model_forward.1} parent=1 // pred_fallthru
      _
    // Predicated region
    $region30: #{lstm_model_forward.1} parent=1 // pred_check
      _
    $region31: #{lstm_model_forward.1} parent=1 // pred_check_branch
      %31 = sbr.rel (0) target = $region33
    $region32: #{lstm_model_forward.1} parent=1 // pred_region
      _
    $region33: #{lstm_model_forward.1} parent=1 // pred_fallthru
      _
    // Predicated region
    $region34: #{lstm_model_forward.1} parent=1 // pred_check
      _
    $region35: #{lstm_model_forward.1} parent=1 // pred_check_branch
      %33 = sbr.rel (0) target = $region37
    $region36: #{lstm_model_forward.1} parent=1 // pred_region
      _
    $region37: #{lstm_model_forward.1} parent=1 // pred_fallthru
      _
    // Predicated region
    $region38: #{lstm_model_forward.1} parent=1 // pred_check
      _
    $region39: #{lstm_model_forward.1} parent=1 // pred_check_branch
      %35 = sbr.rel (0) target = $region41
    $region40: #{lstm_model_forward.1} parent=1 // pred_region
      _
    $region41: #{lstm_model_forward.1} parent=1 // pred_fallthru
      _
    %v37 = vld [vmem:[%s0] sm:$0xff]
    %v38 = vld [vmem:[%s0 + $0x8] sm:$0xff]
    %v39 = vld [vmem:[%s0 + $0x10] sm:$0xff]
    %v40 = vld [vmem:[%s0 + $0x18] sm:$0xff]
    %v41 = vlaneseq
    %v42 = vand.u32 %v41, 127
    %43 = vset.pattern.permute.xlu0 0
    %44 = vperm.xlu0 %43, %v37
    %v45 = vpop.permute.xlu0 %44
    %46 = vset.pattern.permute.xlu0 0
    %47 = vperm.xlu0 %46, %v38
    %v48 = vpop.permute.xlu0 %47
    %49 = vset.pattern.permute.xlu0 0
    %50 = vperm.xlu0 %49, %v39
    %v51 = vpop.permute.xlu0 %50
    %52 = vset.pattern.permute.xlu0 0
    %53 = vperm.xlu0 %52, %v40
    %v54 = vpop.permute.xlu0 %53
    %vm55 = vcmp.eq.s32.totalorder %v42, %v45
    %vm56 = vcmp.eq.s32.totalorder %v42, %v48
    %vm57 = vcmp.eq.s32.totalorder %v42, %v51
    %vm58 = vcmp.eq.s32.totalorder %v42, %v54
    %v59 = vsel %vm55, 1, 0
    %v60 = vsel %vm56, 1, 0
    %v61 = vsel %vm57, 1, 0
    %v62 = vsel %vm58, 1, 0
    %v63 = vcvt.s32.f32 %v59
    %v64 = vcvt.s32.f32 %v60
    %v65 = vcvt.s32.f32 %v61
    %v66 = vcvt.s32.f32 %v62
    %v67 = vld [vmem:[%s1] sm:$0xff]
    %v68 = vld [vmem:[%s1 + $0x8] sm:$0xff]
    %v69 = vld [vmem:[%s1 + $0x10] sm:$0xff]
    %v70 = vld [vmem:[%s1 + $0x18] sm:$0xff]
    %v71 = vld [vmem:[%s1 + $0x20] sm:$0xff]
    %v72 = vld [vmem:[%s1 + $0x28] sm:$0xff]
    %v73 = vld [vmem:[%s1 + $0x30] sm:$0x3]
    %vm74 = vcmask 408576
    %v76 = vsel %vm74, %v63, 0
    %v79 = vsel %vm74, %v64, 0
    %v82 = vsel %vm74, %v65, 0
    %v85 = vsel %vm74, %v66, 0
    %vm87 = vcmask 1041408
    %v89 = vsel %vm87, %v73, 0
    %91 = vmatprep.subr.mxu0 0.0
    %92 = vmatpush1.msra.mxu0 %v67
    %93 = vmatprep.subr.mxu0 0.0
    %94 = vmatpush1.msra.mxu0 %v68
    %95 = vmatprep.subr.mxu0 0.0
    %96 = vmatpush1.msra.mxu0 %v69
    %97 = vmatprep.subr.mxu0 0.0
    %98 = vmatpush1.msra.mxu0 %v70
    %99 = vmatprep.subr.mxu0 0.0
    %100 = vmatpush1.msra.mxu0 %v71
    %101 = vmatprep.subr.mxu0 0.0
    %102 = vmatpush1.msra.mxu0 %v72
    %103 = vmatprep.subr.mxu0 0.0
    %104 = vmatpush1.msra.mxu0 %v89
    %105 = vmatprep.subr.mxu0 0.0
    %106 = vmatpush1.msra.mxu0 0.0
    %107 = vmatprep.subr.mxu0 0.0
    %108 = vmatpush1.msra.mxu0 0.0
    %109 = vmatprep.subr.mxu0 0.0
    %110 = vmatpush1.msra.mxu0 0.0
    %111 = vmatprep.subr.mxu0 0.0
    %112 = vmatpush1.msra.mxu0 0.0
    %113 = vmatprep.subr.mxu0 0.0
    %114 = vmatpush1.msra.mxu0 0.0
    %115 = vmatprep.subr.mxu0 0.0
    %116 = vmatpush1.msra.mxu0 0.0
    %117 = vmatprep.subr.mxu0 0.0
    %118 = vmatpush1.msra.mxu0 0.0
    %119 = vmatprep.subr.mxu0 0.0
    %120 = vmatpush1.msra.mxu0 0.0
    %121 = vmatprep.subr.mxu0 0.0
    %122 = vmatpush1.msra.mxu0 0.0
    %123 = vmatprep.subr.mxu0 0.0
    %124 = vmatpush1.msra.mxu0 0.0
    %125 = vmatprep.subr.mxu0 0.0
    %126 = vmatpush1.msra.mxu0 0.0
    %127 = vmatprep.subr.mxu0 0.0
    %128 = vmatpush1.msra.mxu0 0.0
    %129 = vmatprep.subr.mxu0 0.0
    %130 = vmatpush1.msra.mxu0 0.0
    %131 = vmatprep.subr.mxu0 0.0
    %132 = vmatpush1.msra.mxu0 0.0
    %133 = vmatprep.subr.mxu0 0.0
    %134 = vmatpush1.msra.mxu0 0.0
    %135 = vmatprep.subr.mxu0 0.0
    %136 = vmatpush1.msra.mxu0 0.0
    %137 = vmatprep.subr.mxu0 0.0
    %138 = vmatpush1.msra.mxu0 0.0
    %139 = vmatprep.subr.mxu0 0.0
    %140 = vmatpush1.msra.mxu0 0.0
    %141 = vmatprep.subr.mxu0 0.0
    %142 = vmatpush1.msra.mxu0 0.0
    %143 = vmatprep.subr.mxu0 0.0
    %144 = vmatpush1.msra.mxu0 0.0
    %145 = vmatprep.subr.mxu0 0.0
    %146 = vmatpush1.msra.mxu0 0.0
    %147 = vmatprep.subr.mxu0 0.0
    %148 = vmatpush1.msra.mxu0 0.0
    %149 = vmatprep.subr.mxu0 0.0
    %150 = vmatpush1.msra.mxu0 0.0
    %151 = vmatprep.subr.mxu0 0.0
    %152 = vmatpush1.msra.mxu0 0.0
    %153 = vmatprep.subr.mxu0 0.0
    %154 = vmatpush1.msra.mxu0 0.0
    %155 = vmatprep.mubr.f32.mxu0 0.0
    %156 = vmatmul.mubr.f32.gmra.mrb[0].mxu0 %v76
    %v157 = vpop.f32.mrb[0].mxu0
    %v158 = vadd.f32 0.0, %v157
    %v159 = vpop.f32.mrb[0].mxu0
    %160 = vmatprep.mubr.f32.mxu0 0.0
    %161 = vmatmul.mubr.f32.gmra.mrb[0].mxu0 %v79
    %v162 = vpop.f32.mrb[0].mxu0
    %v163 = vadd.f32 0.0, %v162
    %v164 = vpop.f32.mrb[0].mxu0
    %165 = vmatprep.mubr.f32.mxu0 0.0
    %166 = vmatmul.mubr.f32.gmra.mrb[0].mxu0 %v82
    %v167 = vpop.f32.mrb[0].mxu0
    %v168 = vadd.f32 0.0, %v167
    %v169 = vpop.f32.mrb[0].mxu0
    %170 = vmatprep.mubr.f32.mxu0 0.0
    %171 = vmatmul.mubr.f32.gmra.mrb[0].mxu0 %v85
    %v172 = vpop.f32.mrb[0].mxu0
    %v173 = vadd.f32 0.0, %v172
    %v174 = vpop.f32.mrb[0].mxu0
    %175 = vdwg.mxu0
    %178 = vrot.lane.b32.xlu0 %v168, 16
    %v179 = vpop.permute.xlu0 %178
    %180 = vrot.lane.b32.xlu0 %v173, 16
    %v181 = vpop.permute.xlu0 %180
    %vm184 = vcmask 130048
    %v185 = vsel %vm184, %v158, %v179
    %v186 = vsel %vm184, %v163, %v181
    %v187 = vpack.c.bf16 %v186, %v185
    %v188 = vld [vmem:[%s2] sm:$0xff]
    %v189 = vld [vmem:[%s2 + $0x8] sm:$0xff]
    %v190 = vld [vmem:[%s2 + $0x10] sm:$0xff]
    %v191 = vld [vmem:[%s2 + $0x18] sm:$0xff]
    %v192 = vld [vmem:[%s4] sm:$0x3]
    %v194 = vlaneseq
    %v195 = vshrl.u32 %v194, 7
    %v196 = vsub.s32 0, %v195
    %v197 = vrot.slane %v192, %v196
    %v198 = vlaneseq
    %v199 = vshrl.u32 %v198, 7
    %v200 = vsub.s32 1, %v199
    %v201 = vrot.slane %v192, %v200
    %v208 = vunpack.c.l.b16 %v188
    %v209 = vunpack.c.h.b16 %v188
    %v210 = vunpack.c.l.b16 %v189
    %v211 = vunpack.c.h.b16 %v189
    %v212 = vunpack.c.l.b16 %v190
    %v213 = vunpack.c.h.b16 %v190
    %v214 = vunpack.c.l.b16 %v191
    %v215 = vunpack.c.h.b16 %v191
    %v216 = vpack.c.b16 %v210, %v208
    %v217 = vpack.c.b16 %v211, %v209
    %v218 = vpack.c.b16 %v214, %v212
    %v219 = vpack.c.b16 %v215, %v213
    %vm224 = vcmask 261120
    %v226 = vsel %vm224, %v187, 0
    %228 = vmatprep.subr.bf16.mxu0 %v217
    %229 = vmatpush1.bf16.msra.mxu0 %v216
    %230 = vmatprep.subr.bf16.mxu0 %v219
    %231 = vmatpush1.bf16.msra.mxu0 %v218
    %232 = vmatprep.subr.bf16.mxu0 0
    %233 = vmatpush1.bf16.msra.mxu0 0
    %234 = vmatprep.subr.bf16.mxu0 0
    %235 = vmatpush1.bf16.msra.mxu0 0
    %236 = vmatprep.subr.bf16.mxu0 0
    %237 = vmatpush1.bf16.msra.mxu0 0
    %238 = vmatprep.subr.bf16.mxu0 0
    %239 = vmatpush1.bf16.msra.mxu0 0
    %240 = vmatprep.subr.bf16.mxu0 0
    %241 = vmatpush1.bf16.msra.mxu0 0
    %242 = vmatprep.subr.bf16.mxu0 0
    %243 = vmatpush1.bf16.msra.mxu0 0
    %244 = vmatprep.subr.bf16.mxu0 0
    %245 = vmatpush1.bf16.msra.mxu0 0
    %246 = vmatprep.subr.bf16.mxu0 0
    %247 = vmatpush1.bf16.msra.mxu0 0
    %248 = vmatprep.subr.bf16.mxu0 0
    %249 = vmatpush1.bf16.msra.mxu0 0
    %250 = vmatprep.subr.bf16.mxu0 0
    %251 = vmatpush1.bf16.msra.mxu0 0
    %252 = vmatprep.subr.bf16.mxu0 0
    %253 = vmatpush1.bf16.msra.mxu0 0
    %254 = vmatprep.subr.bf16.mxu0 0
    %255 = vmatpush1.bf16.msra.mxu0 0
    %256 = vmatprep.subr.bf16.mxu0 0
    %257 = vmatpush1.bf16.msra.mxu0 0
    %258 = vmatprep.subr.bf16.mxu0 0
    %259 = vmatpush1.bf16.msra.mxu0 0
    %260 = vmatprep.mubr.bf16.mxu0 0
    %261 = vmatmul.mubr.bf16.gmra.mrb[0].mxu0 %v226
    %v262 = vpop.f32.mrb[0].mxu0
    %v263 = vadd.f32 %v197, %v262
    %v264 = vpop.f32.mrb[0].mxu0
    %v265 = vadd.f32 %v201, %v264
    %v266 = vpop.f32.mrb[0].mxu0
    %v267 = vadd.f32 %v197, %v266
    %v268 = vpop.f32.mrb[0].mxu0
    %v269 = vadd.f32 %v201, %v268
    %270 = vdwg.mxu0
    %v271 = vld [vmem:[%s3] sm:$0xff]
    %v272 = vld [vmem:[%s3 + $0x8] sm:$0xff]
    %v273 = vld [vmem:[%s3 + $0x10] sm:$0xff]
    %v274 = vld [vmem:[%s3 + $0x18] sm:$0xff]
    %v275 = vld [vmem:[%s3 + $0x20] sm:$0xff]
    %v276 = vld [vmem:[%s3 + $0x28] sm:$0xff]
    %v277 = vld [vmem:[%s3 + $0x30] sm:$0xff]
    %v278 = vld [vmem:[%s3 + $0x38] sm:$0xff]
    %v279 = vxor.u32 %v263, 2147483648
    %v280 = vxor.u32 %v265, 2147483648
    %v281 = vmul.f32 %v279, 1.442695
    %v282 = vpow.pop %v281
    %v283 = vmul.f32 %v280, 1.442695
    %v284 = vpow.pop %v283
    %v285 = vadd.f32 %v282, 1.0
    %v286 = vadd.f32 %v284, 1.0
    %v287 = vrcp.pop %v285
    %v288 = vmul.f32 1.0, %v287
    %v289 = vrcp.pop %v286
    %v290 = vmul.f32 1.0, %v289
    %v291 = vtanh.pop %v265
    %v292 = vmul.f32 %v288, 0.0
    %294 = vrot.lane.b32.xlu0 %v291, 64
    %v295 = vpop.permute.xlu0 %294
    %v297 = vmul.f32 %v288, %v295
    %299 = vrot.lane.b32.xlu0 %v297, 64
    %v300 = vpop.permute.xlu0 %299
    %v302 = vadd.f32 %v292, %v300
    %v303 = vtanh.pop %v302
    %305 = vrot.lane.b32.xlu0 %v303, 64
    %v306 = vpop.permute.xlu0 %305
    %v308 = vmul.f32 %v290, %v306
    %v309 = vpack.c.bf16 %v308, %v308
    %v318 = vunpack.c.l.b16 %v271
    %v319 = vunpack.c.h.b16 %v271
    %v320 = vunpack.c.l.b16 %v272
    %v321 = vunpack.c.h.b16 %v272
    %v322 = vunpack.c.l.b16 %v273
    %v323 = vunpack.c.h.b16 %v273
    %v324 = vunpack.c.l.b16 %v274
    %v325 = vunpack.c.h.b16 %v274
    %v326 = vunpack.c.l.b16 %v275
    %v327 = vunpack.c.h.b16 %v275
    %v328 = vunpack.c.l.b16 %v276
    %v329 = vunpack.c.h.b16 %v276
    %v330 = vunpack.c.l.b16 %v277
    %v331 = vunpack.c.h.b16 %v277
    %v332 = vunpack.c.l.b16 %v278
    %v333 = vunpack.c.h.b16 %v278
    %v334 = vpack.c.b16 %v320, %v318
    %v335 = vpack.c.b16 %v321, %v319
    %v336 = vpack.c.b16 %v324, %v322
    %v337 = vpack.c.b16 %v325, %v323
    %v338 = vpack.c.b16 %v328, %v326
    %v339 = vpack.c.b16 %v329, %v327
    %v340 = vpack.c.b16 %v332, %v330
    %v341 = vpack.c.b16 %v333, %v331
    %vm350 = vcmask 523264
    %v352 = vsel %vm350, %v309, 0
    %354 = vmatprep.subr.bf16.mxu0 %v335
    %355 = vmatpush1.bf16.msra.mxu0 %v334
    %356 = vmatprep.subr.bf16.mxu0 %v337
    %357 = vmatpush1.bf16.msra.mxu0 %v336
    %358 = vmatprep.subr.bf16.mxu0 %v339
    %359 = vmatpush1.bf16.msra.mxu0 %v338
    %360 = vmatprep.subr.bf16.mxu0 %v341
    %361 = vmatpush1.bf16.msra.mxu0 %v340
    %362 = vmatprep.subr.bf16.mxu0 0
    %363 = vmatpush1.bf16.msra.mxu0 0
    %364 = vmatprep.subr.bf16.mxu0 0
    %365 = vmatpush1.bf16.msra.mxu0 0
    %366 = vmatprep.subr.bf16.mxu0 0
    %367 = vmatpush1.bf16.msra.mxu0 0
    %368 = vmatprep.subr.bf16.mxu0 0
    %369 = vmatpush1.bf16.msra.mxu0 0
    %370 = vmatprep.subr.bf16.mxu0 0
    %371 = vmatpush1.bf16.msra.mxu0 0
    %372 = vmatprep.subr.bf16.mxu0 0
    %373 = vmatpush1.bf16.msra.mxu0 0
    %374 = vmatprep.subr.bf16.mxu0 0
    %375 = vmatpush1.bf16.msra.mxu0 0
    %376 = vmatprep.subr.bf16.mxu0 0
    %377 = vmatpush1.bf16.msra.mxu0 0
    %378 = vmatprep.subr.bf16.mxu0 0
    %379 = vmatpush1.bf16.msra.mxu0 0
    %380 = vmatprep.subr.bf16.mxu0 0
    %381 = vmatpush1.bf16.msra.mxu0 0
    %382 = vmatprep.subr.bf16.mxu0 0
    %383 = vmatpush1.bf16.msra.mxu0 0
    %384 = vmatprep.subr.bf16.mxu0 0
    %385 = vmatpush1.bf16.msra.mxu0 0
    %386 = vmatprep.mubr.bf16.mxu0 0
    %387 = vmatmul.mubr.bf16.gmra.mrb[0].mxu0 %v352
    %v388 = vpop.f32.mrb[0].mxu0
    %v389 = vadd.f32 0.0, %v388
    %v390 = vpop.f32.mrb[0].mxu0
    %v391 = vadd.f32 0.0, %v390
    %v392 = vpop.f32.mrb[0].mxu0
    %v393 = vpop.f32.mrb[0].mxu0
    %394 = vdwg.mxu0
    %v397 = vrot.slane %v389, 6
    %v398 = vrot.slane %v391, 6
    %v401 = vadd.f32 %v263, %v397
    %v402 = vadd.f32 %v265, %v398
    %v403 = vxor.u32 %v401, 2147483648
    %v404 = vxor.u32 %v402, 2147483648
    %v405 = vmul.f32 %v403, 1.442695
    %v406 = vpow.pop %v405
    %v407 = vmul.f32 %v404, 1.442695
    %v408 = vpow.pop %v407
    %v409 = vadd.f32 %v406, 1.0
    %v410 = vadd.f32 %v408, 1.0
    %v411 = vrcp.pop %v409
    %v412 = vmul.f32 1.0, %v411
    %v413 = vrcp.pop %v410
    %v414 = vmul.f32 1.0, %v413
    %v415 = vtanh.pop %v402
    %v417 = vrot.slane %v302, 6
    %v419 = vmul.f32 %v412, %v417
    %421 = vrot.lane.b32.xlu0 %v415, 64
    %v422 = vpop.permute.xlu0 %421
    %v424 = vmul.f32 %v412, %v422
    %426 = vrot.lane.b32.xlu0 %v424, 64
    %v427 = vpop.permute.xlu0 %426
    %v429 = vadd.f32 %v419, %v427
    %v430 = vtanh.pop %v429
    %432 = vrot.lane.b32.xlu0 %v430, 64
    %v433 = vpop.permute.xlu0 %432
    %v435 = vmul.f32 %v414, %v433
    %v436 = vpack.c.bf16 %v435, %v435
    %v438 = vrot.slane %v436, 1
    %v440 = vsel %vm350, %v438, 0
    %442 = vmatprep.subr.bf16.mxu0 %v335
    %443 = vmatpush1.bf16.msra.mxu0 %v334
    %444 = vmatprep.subr.bf16.mxu0 %v337
    %445 = vmatpush1.bf16.msra.mxu0 %v336
    %446 = vmatprep.subr.bf16.mxu0 %v339
    %447 = vmatpush1.bf16.msra.mxu0 %v338
    %448 = vmatprep.subr.bf16.mxu0 %v341
    %449 = vmatpush1.bf16.msra.mxu0 %v340
    %450 = vmatprep.subr.bf16.mxu0 0
    %451 = vmatpush1.bf16.msra.mxu0 0
    %452 = vmatprep.subr.bf16.mxu0 0
    %453 = vmatpush1.bf16.msra.mxu0 0
    %454 = vmatprep.subr.bf16.mxu0 0
    %455 = vmatpush1.bf16.msra.mxu0 0
    %456 = vmatprep.subr.bf16.mxu0 0
    %457 = vmatpush1.bf16.msra.mxu0 0
    %458 = vmatprep.subr.bf16.mxu0 0
    %459 = vmatpush1.bf16.msra.mxu0 0
    %460 = vmatprep.subr.bf16.mxu0 0
    %461 = vmatpush1.bf16.msra.mxu0 0
    %462 = vmatprep.subr.bf16.mxu0 0
    %463 = vmatpush1.bf16.msra.mxu0 0
    %464 = vmatprep.subr.bf16.mxu0 0
    %465 = vmatpush1.bf16.msra.mxu0 0
    %466 = vmatprep.subr.bf16.mxu0 0
    %467 = vmatpush1.bf16.msra.mxu0 0
    %468 = vmatprep.subr.bf16.mxu0 0
    %469 = vmatpush1.bf16.msra.mxu0 0
    %470 = vmatprep.subr.bf16.mxu0 0
    %471 = vmatpush1.bf16.msra.mxu0 0
    %472 = vmatprep.subr.bf16.mxu0 0
    %473 = vmatpush1.bf16.msra.mxu0 0
    %474 = vmatprep.mubr.bf16.mxu0 0
    %475 = vmatmul.mubr.bf16.gmra.mrb[0].mxu0 %v440
    %v476 = vpop.f32.mrb[0].mxu0
    %v477 = vadd.f32 0.0, %v476
    %v478 = vpop.f32.mrb[0].mxu0
    %v479 = vadd.f32 0.0, %v478
    %v480 = vpop.f32.mrb[0].mxu0
    %v481 = vpop.f32.mrb[0].mxu0
    %482 = vdwg.mxu0
    %v485 = vrot.slane %v477, 4
    %v486 = vrot.slane %v479, 4
    %v489 = vadd.f32 %v263, %v485
    %v490 = vadd.f32 %v265, %v486
    %v491 = vxor.u32 %v489, 2147483648
    %v492 = vxor.u32 %v490, 2147483648
    %v493 = vmul.f32 %v491, 1.442695
    %v494 = vpow.pop %v493
    %v495 = vmul.f32 %v492, 1.442695
    %v496 = vpow.pop %v495
    %v497 = vadd.f32 %v494, 1.0
    %v498 = vadd.f32 %v496, 1.0
    %v499 = vrcp.pop %v497
    %v500 = vmul.f32 1.0, %v499
    %v501 = vrcp.pop %v498
    %v502 = vmul.f32 1.0, %v501
    %v503 = vtanh.pop %v490
    %v505 = vrot.slane %v429, 6
    %v507 = vmul.f32 %v500, %v505
    %509 = vrot.lane.b32.xlu0 %v503, 64
    %v510 = vpop.permute.xlu0 %509
    %v512 = vmul.f32 %v500, %v510
    %514 = vrot.lane.b32.xlu0 %v512, 64
    %v515 = vpop.permute.xlu0 %514
    %v517 = vadd.f32 %v507, %v515
    %v518 = vtanh.pop %v517
    %520 = vrot.lane.b32.xlu0 %v518, 64
    %v521 = vpop.permute.xlu0 %520
    %v523 = vmul.f32 %v502, %v521
    %v524 = vpack.c.bf16 %v523, %v523
    %v526 = vrot.slane %v524, 2
    %v528 = vsel %vm350, %v526, 0
    %530 = vmatprep.subr.bf16.mxu0 %v335
    %531 = vmatpush1.bf16.msra.mxu0 %v334
    %532 = vmatprep.subr.bf16.mxu0 %v337
    %533 = vmatpush1.bf16.msra.mxu0 %v336
    %534 = vmatprep.subr.bf16.mxu0 %v339
    %535 = vmatpush1.bf16.msra.mxu0 %v338
    %536 = vmatprep.subr.bf16.mxu0 %v341
    %537 = vmatpush1.bf16.msra.mxu0 %v340
    %538 = vmatprep.subr.bf16.mxu0 0
    %539 = vmatpush1.bf16.msra.mxu0 0
    %540 = vmatprep.subr.bf16.mxu0 0
    %541 = vmatpush1.bf16.msra.mxu0 0
    %542 = vmatprep.subr.bf16.mxu0 0
    %543 = vmatpush1.bf16.msra.mxu0 0
    %544 = vmatprep.subr.bf16.mxu0 0
    %545 = vmatpush1.bf16.msra.mxu0 0
    %546 = vmatprep.subr.bf16.mxu0 0
    %547 = vmatpush1.bf16.msra.mxu0 0
    %548 = vmatprep.subr.bf16.mxu0 0
    %549 = vmatpush1.bf16.msra.mxu0 0
    %550 = vmatprep.subr.bf16.mxu0 0
    %551 = vmatpush1.bf16.msra.mxu0 0
    %552 = vmatprep.subr.bf16.mxu0 0
    %553 = vmatpush1.bf16.msra.mxu0 0
    %554 = vmatprep.subr.bf16.mxu0 0
    %555 = vmatpush1.bf16.msra.mxu0 0
    %556 = vmatprep.subr.bf16.mxu0 0
    %557 = vmatpush1.bf16.msra.mxu0 0
    %558 = vmatprep.subr.bf16.mxu0 0
    %559 = vmatpush1.bf16.msra.mxu0 0
    %560 = vmatprep.subr.bf16.mxu0 0
    %561 = vmatpush1.bf16.msra.mxu0 0
    %562 = vmatprep.mubr.bf16.mxu0 0
    %563 = vmatmul.mubr.bf16.gmra.mrb[0].mxu0 %v528
    %v564 = vpop.f32.mrb[0].mxu0
    %v565 = vadd.f32 0.0, %v564
    %v566 = vpop.f32.mrb[0].mxu0
    %v567 = vadd.f32 0.0, %v566
    %v568 = vpop.f32.mrb[0].mxu0
    %v569 = vpop.f32.mrb[0].mxu0
    %570 = vdwg.mxu0
    %v573 = vrot.slane %v565, 2
    %v574 = vrot.slane %v567, 2
    %v577 = vadd.f32 %v263, %v573
    %v578 = vadd.f32 %v265, %v574
    %v579 = vxor.u32 %v577, 2147483648
    %v580 = vxor.u32 %v578, 2147483648
    %v581 = vmul.f32 %v579, 1.442695
    %v582 = vpow.pop %v581
    %v583 = vmul.f32 %v580, 1.442695
    %v584 = vpow.pop %v583
    %v585 = vadd.f32 %v582, 1.0
    %v586 = vadd.f32 %v584, 1.0
    %v587 = vrcp.pop %v585
    %v588 = vmul.f32 1.0, %v587
    %v589 = vrcp.pop %v586
    %v590 = vmul.f32 1.0, %v589
    %v591 = vtanh.pop %v578
    %v593 = vrot.slane %v517, 6
    %v595 = vmul.f32 %v588, %v593
    %597 = vrot.lane.b32.xlu0 %v591, 64
    %v598 = vpop.permute.xlu0 %597
    %v600 = vmul.f32 %v588, %v598
    %602 = vrot.lane.b32.xlu0 %v600, 64
    %v603 = vpop.permute.xlu0 %602
    %v605 = vadd.f32 %v595, %v603
    %v606 = vtanh.pop %v605
    %608 = vrot.lane.b32.xlu0 %v606, 64
    %v609 = vpop.permute.xlu0 %608
    %v611 = vmul.f32 %v590, %v609
    %v612 = vpack.c.bf16 %v611, %v611
    %v614 = vrot.slane %v612, 3
    %v616 = vsel %vm350, %v614, 0
    %618 = vmatprep.subr.bf16.mxu0 %v335
    %619 = vmatpush1.bf16.msra.mxu0 %v334
    %620 = vmatprep.subr.bf16.mxu0 %v337
    %621 = vmatpush1.bf16.msra.mxu0 %v336
    %622 = vmatprep.subr.bf16.mxu0 %v339
    %623 = vmatpush1.bf16.msra.mxu0 %v338
    %624 = vmatprep.subr.bf16.mxu0 %v341
    %625 = vmatpush1.bf16.msra.mxu0 %v340
    %626 = vmatprep.subr.bf16.mxu0 0
    %627 = vmatpush1.bf16.msra.mxu0 0
    %628 = vmatprep.subr.bf16.mxu0 0
    %629 = vmatpush1.bf16.msra.mxu0 0
    %630 = vmatprep.subr.bf16.mxu0 0
    %631 = vmatpush1.bf16.msra.mxu0 0
    %632 = vmatprep.subr.bf16.mxu0 0
    %633 = vmatpush1.bf16.msra.mxu0 0
    %634 = vmatprep.subr.bf16.mxu0 0
    %635 = vmatpush1.bf16.msra.mxu0 0
    %636 = vmatprep.subr.bf16.mxu0 0
    %637 = vmatpush1.bf16.msra.mxu0 0
    %638 = vmatprep.subr.bf16.mxu0 0
    %639 = vmatpush1.bf16.msra.mxu0 0
    %640 = vmatprep.subr.bf16.mxu0 0
    %641 = vmatpush1.bf16.msra.mxu0 0
    %642 = vmatprep.subr.bf16.mxu0 0
    %643 = vmatpush1.bf16.msra.mxu0 0
    %644 = vmatprep.subr.bf16.mxu0 0
    %645 = vmatpush1.bf16.msra.mxu0 0
    %646 = vmatprep.subr.bf16.mxu0 0
    %647 = vmatpush1.bf16.msra.mxu0 0
    %648 = vmatprep.subr.bf16.mxu0 0
    %649 = vmatpush1.bf16.msra.mxu0 0
    %650 = vmatprep.mubr.bf16.mxu0 0
    %651 = vmatmul.mubr.bf16.gmra.mrb[0].mxu0 %v616
    %v652 = vpop.f32.mrb[0].mxu0
    %v653 = vadd.f32 0.0, %v652
    %v654 = vpop.f32.mrb[0].mxu0
    %v655 = vadd.f32 0.0, %v654
    %v656 = vpop.f32.mrb[0].mxu0
    %v657 = vpop.f32.mrb[0].mxu0
    %658 = vdwg.mxu0
    %v659 = vadd.f32 %v267, %v653
    %v660 = vadd.f32 %v269, %v655
    %v661 = vxor.u32 %v659, 2147483648
    %v662 = vxor.u32 %v660, 2147483648
    %v663 = vmul.f32 %v661, 1.442695
    %v664 = vpow.pop %v663
    %v665 = vmul.f32 %v662, 1.442695
    %v666 = vpow.pop %v665
    %v667 = vadd.f32 %v664, 1.0
    %v668 = vadd.f32 %v666, 1.0
    %v669 = vrcp.pop %v667
    %v670 = vmul.f32 1.0, %v669
    %v671 = vrcp.pop %v668
    %v672 = vmul.f32 1.0, %v671
    %v673 = vtanh.pop %v660
    %v675 = vrot.slane %v605, 6
    %v677 = vmul.f32 %v670, %v675
    %679 = vrot.lane.b32.xlu0 %v673, 64
    %v680 = vpop.permute.xlu0 %679
    %v682 = vmul.f32 %v670, %v680
    %684 = vrot.lane.b32.xlu0 %v682, 64
    %v685 = vpop.permute.xlu0 %684
    %v687 = vadd.f32 %v677, %v685
    %v688 = vtanh.pop %v687
    %690 = vrot.lane.b32.xlu0 %v688, 64
    %v691 = vpop.permute.xlu0 %690
    %v693 = vmul.f32 %v672, %v691
    %v694 = vpack.c.bf16 %v693, %v693
    %v696 = vsel %vm350, %v694, 0
    %698 = vmatprep.subr.bf16.mxu0 %v335
    %699 = vmatpush1.bf16.msra.mxu0 %v334
    %700 = vmatprep.subr.bf16.mxu0 %v337
    %701 = vmatpush1.bf16.msra.mxu0 %v336
    %702 = vmatprep.subr.bf16.mxu0 %v339
    %703 = vmatpush1.bf16.msra.mxu0 %v338
    %704 = vmatprep.subr.bf16.mxu0 %v341
    %705 = vmatpush1.bf16.msra.mxu0 %v340
    %706 = vmatprep.subr.bf16.mxu0 0
    %707 = vmatpush1.bf16.msra.mxu0 0
    %708 = vmatprep.subr.bf16.mxu0 0
    %709 = vmatpush1.bf16.msra.mxu0 0
    %710 = vmatprep.subr.bf16.mxu0 0
    %711 = vmatpush1.bf16.msra.mxu0 0
    %712 = vmatprep.subr.bf16.mxu0 0
    %713 = vmatpush1.bf16.msra.mxu0 0
    %714 = vmatprep.subr.bf16.mxu0 0
    %715 = vmatpush1.bf16.msra.mxu0 0
    %716 = vmatprep.subr.bf16.mxu0 0
    %717 = vmatpush1.bf16.msra.mxu0 0
    %718 = vmatprep.subr.bf16.mxu0 0
    %719 = vmatpush1.bf16.msra.mxu0 0
    %720 = vmatprep.subr.bf16.mxu0 0
    %721 = vmatpush1.bf16.msra.mxu0 0
    %722 = vmatprep.subr.bf16.mxu0 0
    %723 = vmatpush1.bf16.msra.mxu0 0
    %724 = vmatprep.subr.bf16.mxu0 0
    %725 = vmatpush1.bf16.msra.mxu0 0
    %726 = vmatprep.subr.bf16.mxu0 0
    %727 = vmatpush1.bf16.msra.mxu0 0
    %728 = vmatprep.subr.bf16.mxu0 0
    %729 = vmatpush1.bf16.msra.mxu0 0
    %730 = vmatprep.mubr.bf16.mxu0 0
    %731 = vmatmul.mubr.bf16.gmra.mrb[0].mxu0 %v696
    %v732 = vpop.f32.mrb[0].mxu0
    %v733 = vadd.f32 0.0, %v732
    %v734 = vpop.f32.mrb[0].mxu0
    %v735 = vadd.f32 0.0, %v734
    %v736 = vpop.f32.mrb[0].mxu0
    %v737 = vpop.f32.mrb[0].mxu0
    %738 = vdwg.mxu0
    %v741 = vrot.slane %v733, 6
    %v742 = vrot.slane %v735, 6
    %v745 = vadd.f32 %v267, %v741
    %v746 = vadd.f32 %v269, %v742
    %v747 = vxor.u32 %v745, 2147483648
    %v748 = vxor.u32 %v746, 2147483648
    %v749 = vmul.f32 %v747, 1.442695
    %v750 = vpow.pop %v749
    %v751 = vmul.f32 %v748, 1.442695
    %v752 = vpow.pop %v751
    %v753 = vadd.f32 %v750, 1.0
    %v754 = vadd.f32 %v752, 1.0
    %v755 = vrcp.pop %v753
    %v756 = vmul.f32 1.0, %v755
    %v757 = vrcp.pop %v754
    %v758 = vmul.f32 1.0, %v757
    %v759 = vtanh.pop %v746
    %v761 = vrot.slane %v687, 6
    %v763 = vmul.f32 %v756, %v761
    %765 = vrot.lane.b32.xlu0 %v759, 64
    %v766 = vpop.permute.xlu0 %765
    %v768 = vmul.f32 %v756, %v766
    %770 = vrot.lane.b32.xlu0 %v768, 64
    %v771 = vpop.permute.xlu0 %770
    %v773 = vadd.f32 %v763, %v771
    %v774 = vtanh.pop %v773
    %776 = vrot.lane.b32.xlu0 %v774, 64
    %v777 = vpop.permute.xlu0 %776
    %v779 = vmul.f32 %v758, %v777
    %v780 = vpack.c.bf16 %v779, %v779
    %v782 = vrot.slane %v780, 1
    %v784 = vsel %vm350, %v782, 0
    %786 = vmatprep.subr.bf16.mxu0 %v335
    %787 = vmatpush1.bf16.msra.mxu0 %v334
    %788 = vmatprep.subr.bf16.mxu0 %v337
    %789 = vmatpush1.bf16.msra.mxu0 %v336
    %790 = vmatprep.subr.bf16.mxu0 %v339
    %791 = vmatpush1.bf16.msra.mxu0 %v338
    %792 = vmatprep.subr.bf16.mxu0 %v341
    %793 = vmatpush1.bf16.msra.mxu0 %v340
    %794 = vmatprep.subr.bf16.mxu0 0
    %795 = vmatpush1.bf16.msra.mxu0 0
    %796 = vmatprep.subr.bf16.mxu0 0
    %797 = vmatpush1.bf16.msra.mxu0 0
    %798 = vmatprep.subr.bf16.mxu0 0
    %799 = vmatpush1.bf16.msra.mxu0 0
    %800 = vmatprep.subr.bf16.mxu0 0
    %801 = vmatpush1.bf16.msra.mxu0 0
    %802 = vmatprep.subr.bf16.mxu0 0
    %803 = vmatpush1.bf16.msra.mxu0 0
    %804 = vmatprep.subr.bf16.mxu0 0
    %805 = vmatpush1.bf16.msra.mxu0 0
    %806 = vmatprep.subr.bf16.mxu0 0
    %807 = vmatpush1.bf16.msra.mxu0 0
    %808 = vmatprep.subr.bf16.mxu0 0
    %809 = vmatpush1.bf16.msra.mxu0 0
    %810 = vmatprep.subr.bf16.mxu0 0
    %811 = vmatpush1.bf16.msra.mxu0 0
    %812 = vmatprep.subr.bf16.mxu0 0
    %813 = vmatpush1.bf16.msra.mxu0 0
    %814 = vmatprep.subr.bf16.mxu0 0
    %815 = vmatpush1.bf16.msra.mxu0 0
    %816 = vmatprep.subr.bf16.mxu0 0
    %817 = vmatpush1.bf16.msra.mxu0 0
    %818 = vmatprep.mubr.bf16.mxu0 0
    %819 = vmatmul.mubr.bf16.gmra.mrb[0].mxu0 %v784
    %v820 = vpop.f32.mrb[0].mxu0
    %v821 = vadd.f32 0.0, %v820
    %v822 = vpop.f32.mrb[0].mxu0
    %v823 = vadd.f32 0.0, %v822
    %v824 = vpop.f32.mrb[0].mxu0
    %v825 = vpop.f32.mrb[0].mxu0
    %826 = vdwg.mxu0
    %v829 = vrot.slane %v821, 4
    %v830 = vrot.slane %v823, 4
    %v833 = vadd.f32 %v267, %v829
    %v834 = vadd.f32 %v269, %v830
    %v835 = vxor.u32 %v833, 2147483648
    %v836 = vxor.u32 %v834, 2147483648
    %v837 = vmul.f32 %v835, 1.442695
    %v838 = vpow.pop %v837
    %v839 = vmul.f32 %v836, 1.442695
    %v840 = vpow.pop %v839
    %v841 = vadd.f32 %v838, 1.0
    %v842 = vadd.f32 %v840, 1.0
    %v843 = vrcp.pop %v841
    %v844 = vmul.f32 1.0, %v843
    %v845 = vrcp.pop %v842
    %v846 = vmul.f32 1.0, %v845
    %v847 = vtanh.pop %v834
    %v849 = vrot.slane %v773, 6
    %v851 = vmul.f32 %v844, %v849
    %853 = vrot.lane.b32.xlu0 %v847, 64
    %v854 = vpop.permute.xlu0 %853
    %v856 = vmul.f32 %v844, %v854
    %858 = vrot.lane.b32.xlu0 %v856, 64
    %v859 = vpop.permute.xlu0 %858
    %v861 = vadd.f32 %v851, %v859
    %v862 = vtanh.pop %v861
    %864 = vrot.lane.b32.xlu0 %v862, 64
    %v865 = vpop.permute.xlu0 %864
    %v867 = vmul.f32 %v846, %v865
    %v868 = vpack.c.bf16 %v867, %v867
    %v870 = vrot.slane %v868, 2
    %v872 = vsel %vm350, %v870, 0
    %874 = vmatprep.subr.bf16.mxu0 %v335
    %875 = vmatpush1.bf16.msra.mxu0 %v334
    %876 = vmatprep.subr.bf16.mxu0 %v337
    %877 = vmatpush1.bf16.msra.mxu0 %v336
    %878 = vmatprep.subr.bf16.mxu0 %v339
    %879 = vmatpush1.bf16.msra.mxu0 %v338
    %880 = vmatprep.subr.bf16.mxu0 %v341
    %881 = vmatpush1.bf16.msra.mxu0 %v340
    %882 = vmatprep.subr.bf16.mxu0 0
    %883 = vmatpush1.bf16.msra.mxu0 0
    %884 = vmatprep.subr.bf16.mxu0 0
    %885 = vmatpush1.bf16.msra.mxu0 0
    %886 = vmatprep.subr.bf16.mxu0 0
    %887 = vmatpush1.bf16.msra.mxu0 0
    %888 = vmatprep.subr.bf16.mxu0 0
    %889 = vmatpush1.bf16.msra.mxu0 0
    %890 = vmatprep.subr.bf16.mxu0 0
    %891 = vmatpush1.bf16.msra.mxu0 0
    %892 = vmatprep.subr.bf16.mxu0 0
    %893 = vmatpush1.bf16.msra.mxu0 0
    %894 = vmatprep.subr.bf16.mxu0 0
    %895 = vmatpush1.bf16.msra.mxu0 0
    %896 = vmatprep.subr.bf16.mxu0 0
    %897 = vmatpush1.bf16.msra.mxu0 0
    %898 = vmatprep.subr.bf16.mxu0 0
    %899 = vmatpush1.bf16.msra.mxu0 0
    %900 = vmatprep.subr.bf16.mxu0 0
    %901 = vmatpush1.bf16.msra.mxu0 0
    %902 = vmatprep.subr.bf16.mxu0 0
    %903 = vmatpush1.bf16.msra.mxu0 0
    %904 = vmatprep.subr.bf16.mxu0 0
    %905 = vmatpush1.bf16.msra.mxu0 0
    %906 = vmatprep.mubr.bf16.mxu0 0
    %907 = vmatmul.mubr.bf16.gmra.mrb[0].mxu0 %v872
    %v908 = vpop.f32.mrb[0].mxu0
    %v909 = vadd.f32 0.0, %v908
    %v910 = vpop.f32.mrb[0].mxu0
    %v911 = vadd.f32 0.0, %v910
    %v912 = vpop.f32.mrb[0].mxu0
    %v913 = vpop.f32.mrb[0].mxu0
    %914 = vdwg.mxu0
    %v917 = vrot.slane %v909, 2
    %v918 = vrot.slane %v911, 2
    %v921 = vadd.f32 %v267, %v917
    %v922 = vadd.f32 %v269, %v918
    %v923 = vxor.u32 %v921, 2147483648
    %v924 = vxor.u32 %v922, 2147483648
    %v925 = vmul.f32 %v923, 1.442695
    %v926 = vpow.pop %v925
    %v927 = vmul.f32 %v924, 1.442695
    %v928 = vpow.pop %v927
    %v929 = vadd.f32 %v926, 1.0
    %v930 = vadd.f32 %v928, 1.0
    %v931 = vrcp.pop %v929
    %v932 = vmul.f32 1.0, %v931
    %v933 = vrcp.pop %v930
    %v934 = vmul.f32 1.0, %v933
    %v935 = vtanh.pop %v922
    %v937 = vrot.slane %v861, 6
    %v939 = vmul.f32 %v932, %v937
    %941 = vrot.lane.b32.xlu0 %v935, 64
    %v942 = vpop.permute.xlu0 %941
    %v944 = vmul.f32 %v932, %v942
    %946 = vrot.lane.b32.xlu0 %v944, 64
    %v947 = vpop.permute.xlu0 %946
    %v949 = vadd.f32 %v939, %v947
    %v950 = vtanh.pop %v949
    %952 = vrot.lane.b32.xlu0 %v950, 64
    %v953 = vpop.permute.xlu0 %952
    %v955 = vmul.f32 %v934, %v953
    %v957 = vrot.slane %v955, 6
    %958 = vrot.lane.b32.xlu0 %v957, 64
    %v959 = vpop.permute.xlu0 %958
    %v961 = vsel %vm350, %v308, %v959
    %962 = vst [vmem:[#allocation2] sm:$0x3] %v961
    %v964 = vrot.slane %v867, 2
    %965 = vrot.lane.b32.xlu0 %v964, 64
    %v966 = vpop.permute.xlu0 %965
    %v968 = vsel %vm350, %v435, %v966
    %969 = vst [vmem:[#allocation2] sm:$0xc] %v968
    %v971 = vrot.slane %v779, 6
    %972 = vrot.lane.b32.xlu0 %v971, 64
    %v973 = vpop.permute.xlu0 %972
    %v975 = vsel %vm350, %v523, %v973
    %976 = vst [vmem:[#allocation2] sm:$0x30] %v975
    %v978 = vrot.slane %v693, 2
    %979 = vrot.lane.b32.xlu0 %v978, 64
    %v980 = vpop.permute.xlu0 %979
    %v982 = vsel %vm350, %v611, %v980
    %983 = vst [vmem:[#allocation2] sm:$0xc0] %v982
    %v985 = vrot.slane %v611, 6
    %986 = vrot.lane.b32.xlu0 %v985, 64
    %v987 = vpop.permute.xlu0 %986
    %v989 = vsel %vm350, %v693, %v987
    %990 = vst [vmem:[#allocation2 + $0x8] sm:$0x3] %v989
    %v992 = vrot.slane %v523, 2
    %993 = vrot.lane.b32.xlu0 %v992, 64
    %v994 = vpop.permute.xlu0 %993
    %v996 = vsel %vm350, %v779, %v994
    %997 = vst [vmem:[#allocation2 + $0x8] sm:$0xc] %v996
    %v999 = vrot.slane %v435, 6
    %1000 = vrot.lane.b32.xlu0 %v999, 64
    %v1001 = vpop.permute.xlu0 %1000
    %v1003 = vsel %vm350, %v867, %v1001
    %1004 = vst [vmem:[#allocation2 + $0x8] sm:$0x30] %v1003
    %v1006 = vrot.slane %v308, 2
    %1007 = vrot.lane.b32.xlu0 %v1006, 64
    %v1008 = vpop.permute.xlu0 %1007
    %v1010 = vsel %vm350, %v955, %v1008
    %1011 = vst [vmem:[#allocation2 + $0x8] sm:$0xc0] %v1010
    %v1012 = vld [vmem:[#allocation2] sm:$0xff]
    %v1013 = vld [vmem:[#allocation2 + $0x8] sm:$0xff]
    %v1014 = vpack.c.bf16 %v1013, %v1012
    %v1015 = vld [vmem:[%s5] sm:$0xff]
    %v1016 = vld [vmem:[%s5 + $0x8] sm:$0xff]
    %v1017 = vld [vmem:[%s5 + $0x10] sm:$0xff]
    %v1018 = vld [vmem:[%s5 + $0x18] sm:$0xff]
    %v1019 = vld [vmem:[%s5 + $0x20] sm:$0xff]
    %v1020 = vld [vmem:[%s5 + $0x28] sm:$0xff]
    %v1021 = vld [vmem:[%s5 + $0x30] sm:$0xff]
    %v1022 = vld [vmem:[%s5 + $0x38] sm:$0xff]
    %v1023 = vld [vmem:[%s5 + $0x40] sm:$0xff]
    %v1024 = vld [vmem:[%s5 + $0x48] sm:$0xff]
    %v1025 = vld [vmem:[%s5 + $0x50] sm:$0xff]
    %v1026 = vld [vmem:[%s5 + $0x58] sm:$0xff]
    %v1027 = vld [vmem:[%s5 + $0x60] sm:$0xff]
    %v1028 = vld [vmem:[%s5 + $0x68] sm:$0xff]
    %v1029 = vld [vmem:[%s5 + $0x70] sm:$0xff]
    %v1030 = vld [vmem:[%s5 + $0x78] sm:$0xff]
    %v1031 = vld [vmem:[%s7] sm:$0x3]
    %v1033 = vlaneseq
    %v1034 = vshrl.u32 %v1033, 7
    %v1035 = vsub.s32 0, %v1034
    %v1036 = vrot.slane %v1031, %v1035
    %v1037 = vlaneseq
    %v1038 = vshrl.u32 %v1037, 7
    %v1039 = vsub.s32 1, %v1038
    %v1040 = vrot.slane %v1031, %v1039
    %v1059 = vunpack.c.l.b16 %v1015
    %v1060 = vunpack.c.h.b16 %v1015
    %v1061 = vunpack.c.l.b16 %v1016
    %v1062 = vunpack.c.h.b16 %v1016
    %v1063 = vunpack.c.l.b16 %v1017
    %v1064 = vunpack.c.h.b16 %v1017
    %v1065 = vunpack.c.l.b16 %v1018
    %v1066 = vunpack.c.h.b16 %v1018
    %v1067 = vunpack.c.l.b16 %v1019
    %v1068 = vunpack.c.h.b16 %v1019
    %v1069 = vunpack.c.l.b16 %v1020
    %v1070 = vunpack.c.h.b16 %v1020
    %v1071 = vunpack.c.l.b16 %v1021
    %v1072 = vunpack.c.h.b16 %v1021
    %v1073 = vunpack.c.l.b16 %v1022
    %v1074 = vunpack.c.h.b16 %v1022
    %v1075 = vunpack.c.l.b16 %v1023
    %v1076 = vunpack.c.h.b16 %v1023
    %v1077 = vunpack.c.l.b16 %v1024
    %v1078 = vunpack.c.h.b16 %v1024
    %v1079 = vunpack.c.l.b16 %v1025
    %v1080 = vunpack.c.h.b16 %v1025
    %v1081 = vunpack.c.l.b16 %v1026
    %v1082 = vunpack.c.h.b16 %v1026
    %v1083 = vunpack.c.l.b16 %v1027
    %v1084 = vunpack.c.h.b16 %v1027
    %v1085 = vunpack.c.l.b16 %v1028
    %v1086 = vunpack.c.h.b16 %v1028
    %v1087 = vunpack.c.l.b16 %v1029
    %v1088 = vunpack.c.h.b16 %v1029
    %v1089 = vunpack.c.l.b16 %v1030
    %v1090 = vunpack.c.h.b16 %v1030
    %v1091 = vpack.c.b16 %v1061, %v1059
    %v1092 = vpack.c.b16 %v1062, %v1060
    %v1093 = vpack.c.b16 %v1065, %v1063
    %v1094 = vpack.c.b16 %v1066, %v1064
    %v1095 = vpack.c.b16 %v1069, %v1067
    %v1096 = vpack.c.b16 %v1070, %v1068
    %v1097 = vpack.c.b16 %v1073, %v1071
    %v1098 = vpack.c.b16 %v1074, %v1072
    %v1099 = vpack.c.b16 %v1077, %v1075
    %v1100 = vpack.c.b16 %v1078, %v1076
    %v1101 = vpack.c.b16 %v1081, %v1079
    %v1102 = vpack.c.b16 %v1082, %v1080
    %v1103 = vpack.c.b16 %v1085, %v1083
    %v1104 = vpack.c.b16 %v1086, %v1084
    %v1105 = vpack.c.b16 %v1089, %v1087
    %v1106 = vpack.c.b16 %v1090, %v1088
    %1123 = vmatprep.subr.bf16.mxu0 %v1092
    %1124 = vmatpush1.bf16.msra.mxu0 %v1091
    %1125 = vmatprep.subr.bf16.mxu0 %v1094
    %1126 = vmatpush1.bf16.msra.mxu0 %v1093
    %1127 = vmatprep.subr.bf16.mxu0 %v1096
    %1128 = vmatpush1.bf16.msra.mxu0 %v1095
    %1129 = vmatprep.subr.bf16.mxu0 %v1098
    %1130 = vmatpush1.bf16.msra.mxu0 %v1097
    %1131 = vmatprep.subr.bf16.mxu0 %v1100
    %1132 = vmatpush1.bf16.msra.mxu0 %v1099
    %1133 = vmatprep.subr.bf16.mxu0 %v1102
    %1134 = vmatpush1.bf16.msra.mxu0 %v1101
    %1135 = vmatprep.subr.bf16.mxu0 %v1104
    %1136 = vmatpush1.bf16.msra.mxu0 %v1103
    %1137 = vmatprep.subr.bf16.mxu0 %v1106
    %1138 = vmatpush1.bf16.msra.mxu0 %v1105
    %1139 = vmatprep.subr.bf16.mxu0 0
    %1140 = vmatpush1.bf16.msra.mxu0 0
    %1141 = vmatprep.subr.bf16.mxu0 0
    %1142 = vmatpush1.bf16.msra.mxu0 0
    %1143 = vmatprep.subr.bf16.mxu0 0
    %1144 = vmatpush1.bf16.msra.mxu0 0
    %1145 = vmatprep.subr.bf16.mxu0 0
    %1146 = vmatpush1.bf16.msra.mxu0 0
    %1147 = vmatprep.subr.bf16.mxu0 0
    %1148 = vmatpush1.bf16.msra.mxu0 0
    %1149 = vmatprep.subr.bf16.mxu0 0
    %1150 = vmatpush1.bf16.msra.mxu0 0
    %1151 = vmatprep.subr.bf16.mxu0 0
    %1152 = vmatpush1.bf16.msra.mxu0 0
    %1153 = vmatprep.subr.bf16.mxu0 0
    %1154 = vmatpush1.bf16.msra.mxu0 0
    %1155 = vmatprep.mubr.bf16.mxu0 0
    %1156 = vmatmul.mubr.bf16.gmra.mrb[0].mxu0 %v1014
    %v1157 = vpop.f32.mrb[0].mxu0
    %v1158 = vadd.f32 %v1036, %v1157
    %v1159 = vpop.f32.mrb[0].mxu0
    %v1160 = vadd.f32 %v1040, %v1159
    %v1161 = vpop.f32.mrb[0].mxu0
    %v1162 = vadd.f32 %v1036, %v1161
    %v1163 = vpop.f32.mrb[0].mxu0
    %v1164 = vadd.f32 %v1040, %v1163
    %1165 = vdwg.mxu0
    %v1166 = vld [vmem:[%s6] sm:$0xff]
    %v1167 = vld [vmem:[%s6 + $0x8] sm:$0xff]
    %v1168 = vld [vmem:[%s6 + $0x10] sm:$0xff]
    %v1169 = vld [vmem:[%s6 + $0x18] sm:$0xff]
    %v1170 = vld [vmem:[%s6 + $0x20] sm:$0xff]
    %v1171 = vld [vmem:[%s6 + $0x28] sm:$0xff]
    %v1172 = vld [vmem:[%s6 + $0x30] sm:$0xff]
    %v1173 = vld [vmem:[%s6 + $0x38] sm:$0xff]
    %v1174 = vxor.u32 %v1158, 2147483648
    %v1175 = vxor.u32 %v1160, 2147483648
    %v1176 = vmul.f32 %v1174, 1.442695
    %v1177 = vpow.pop %v1176
    %v1178 = vmul.f32 %v1175, 1.442695
    %v1179 = vpow.pop %v1178
    %v1180 = vadd.f32 %v1177, 1.0
    %v1181 = vadd.f32 %v1179, 1.0
    %v1182 = vrcp.pop %v1180
    %v1183 = vmul.f32 1.0, %v1182
    %v1184 = vrcp.pop %v1181
    %v1185 = vmul.f32 1.0, %v1184
    %v1186 = vtanh.pop %v1160
    %v1187 = vmul.f32 %v1183, 0.0
    %1189 = vrot.lane.b32.xlu0 %v1186, 64
    %v1190 = vpop.permute.xlu0 %1189
    %v1192 = vmul.f32 %v1183, %v1190
    %1194 = vrot.lane.b32.xlu0 %v1192, 64
    %v1195 = vpop.permute.xlu0 %1194
    %v1197 = vadd.f32 %v1187, %v1195
    %v1198 = vtanh.pop %v1197
    %1200 = vrot.lane.b32.xlu0 %v1198, 64
    %v1201 = vpop.permute.xlu0 %1200
    %v1203 = vmul.f32 %v1185, %v1201
    %v1204 = vpack.c.bf16 %v1203, %v1203
    %v1213 = vunpack.c.l.b16 %v1166
    %v1214 = vunpack.c.h.b16 %v1166
    %v1215 = vunpack.c.l.b16 %v1167
    %v1216 = vunpack.c.h.b16 %v1167
    %v1217 = vunpack.c.l.b16 %v1168
    %v1218 = vunpack.c.h.b16 %v1168
    %v1219 = vunpack.c.l.b16 %v1169
    %v1220 = vunpack.c.h.b16 %v1169
    %v1221 = vunpack.c.l.b16 %v1170
    %v1222 = vunpack.c.h.b16 %v1170
    %v1223 = vunpack.c.l.b16 %v1171
    %v1224 = vunpack.c.h.b16 %v1171
    %v1225 = vunpack.c.l.b16 %v1172
    %v1226 = vunpack.c.h.b16 %v1172
    %v1227 = vunpack.c.l.b16 %v1173
    %v1228 = vunpack.c.h.b16 %v1173
    %v1229 = vpack.c.b16 %v1215, %v1213
    %v1230 = vpack.c.b16 %v1216, %v1214
    %v1231 = vpack.c.b16 %v1219, %v1217
    %v1232 = vpack.c.b16 %v1220, %v1218
    %v1233 = vpack.c.b16 %v1223, %v1221
    %v1234 = vpack.c.b16 %v1224, %v1222
    %v1235 = vpack.c.b16 %v1227, %v1225
    %v1236 = vpack.c.b16 %v1228, %v1226
    %v1246 = vsel %vm350, %v1204, 0
    %1248 = vmatprep.subr.bf16.mxu0 %v1230
    %1249 = vmatpush1.bf16.msra.mxu0 %v1229
    %1250 = vmatprep.subr.bf16.mxu0 %v1232
    %1251 = vmatpush1.bf16.msra.mxu0 %v1231
    %1252 = vmatprep.subr.bf16.mxu0 %v1234
    %1253 = vmatpush1.bf16.msra.mxu0 %v1233
    %1254 = vmatprep.subr.bf16.mxu0 %v1236
    %1255 = vmatpush1.bf16.msra.mxu0 %v1235
    %1256 = vmatprep.subr.bf16.mxu0 0
    %1257 = vmatpush1.bf16.msra.mxu0 0
    %1258 = vmatprep.subr.bf16.mxu0 0
    %1259 = vmatpush1.bf16.msra.mxu0 0
    %1260 = vmatprep.subr.bf16.mxu0 0
    %1261 = vmatpush1.bf16.msra.mxu0 0
    %1262 = vmatprep.subr.bf16.mxu0 0
    %1263 = vmatpush1.bf16.msra.mxu0 0
    %1264 = vmatprep.subr.bf16.mxu0 0
    %1265 = vmatpush1.bf16.msra.mxu0 0
    %1266 = vmatprep.subr.bf16.mxu0 0
    %1267 = vmatpush1.bf16.msra.mxu0 0
    %1268 = vmatprep.subr.bf16.mxu0 0
    %1269 = vmatpush1.bf16.msra.mxu0 0
    %1270 = vmatprep.subr.bf16.mxu0 0
    %1271 = vmatpush1.bf16.msra.mxu0 0
    %1272 = vmatprep.subr.bf16.mxu0 0
    %1273 = vmatpush1.bf16.msra.mxu0 0
    %1274 = vmatprep.subr.bf16.mxu0 0
    %1275 = vmatpush1.bf16.msra.mxu0 0
    %1276 = vmatprep.subr.bf16.mxu0 0
    %1277 = vmatpush1.bf16.msra.mxu0 0
    %1278 = vmatprep.subr.bf16.mxu0 0
    %1279 = vmatpush1.bf16.msra.mxu0 0
    %1280 = vmatprep.mubr.bf16.mxu0 0
    %1281 = vmatmul.mubr.bf16.gmra.mrb[0].mxu0 %v1246
    %v1282 = vpop.f32.mrb[0].mxu0
    %v1283 = vadd.f32 0.0, %v1282
    %v1284 = vpop.f32.mrb[0].mxu0
    %v1285 = vadd.f32 0.0, %v1284
    %v1286 = vpop.f32.mrb[0].mxu0
    %v1287 = vpop.f32.mrb[0].mxu0
    %1288 = vdwg.mxu0
    %v1291 = vrot.slane %v1283, 6
    %v1292 = vrot.slane %v1285, 6
    %v1295 = vadd.f32 %v1158, %v1291
    %v1296 = vadd.f32 %v1160, %v1292
    %v1297 = vxor.u32 %v1295, 2147483648
    %v1298 = vxor.u32 %v1296, 2147483648
    %v1299 = vmul.f32 %v1297, 1.442695
    %v1300 = vpow.pop %v1299
    %v1301 = vmul.f32 %v1298, 1.442695
    %v1302 = vpow.pop %v1301
    %v1303 = vadd.f32 %v1300, 1.0
    %v1304 = vadd.f32 %v1302, 1.0
    %v1305 = vrcp.pop %v1303
    %v1306 = vmul.f32 1.0, %v1305
    %v1307 = vrcp.pop %v1304
    %v1308 = vmul.f32 1.0, %v1307
    %v1309 = vtanh.pop %v1296
    %v1311 = vrot.slane %v1197, 6
    %v1313 = vmul.f32 %v1306, %v1311
    %1315 = vrot.lane.b32.xlu0 %v1309, 64
    %v1316 = vpop.permute.xlu0 %1315
    %v1318 = vmul.f32 %v1306, %v1316
    %1320 = vrot.lane.b32.xlu0 %v1318, 64
    %v1321 = vpop.permute.xlu0 %1320
    %v1323 = vadd.f32 %v1313, %v1321
    %v1324 = vtanh.pop %v1323
    %1326 = vrot.lane.b32.xlu0 %v1324, 64
    %v1327 = vpop.permute.xlu0 %1326
    %v1329 = vmul.f32 %v1308, %v1327
    %v1330 = vpack.c.bf16 %v1329, %v1329
    %v1332 = vrot.slane %v1330, 1
    %v1334 = vsel %vm350, %v1332, 0
    %1336 = vmatprep.subr.bf16.mxu0 %v1230
    %1337 = vmatpush1.bf16.msra.mxu0 %v1229
    %1338 = vmatprep.subr.bf16.mxu0 %v1232
    %1339 = vmatpush1.bf16.msra.mxu0 %v1231
    %1340 = vmatprep.subr.bf16.mxu0 %v1234
    %1341 = vmatpush1.bf16.msra.mxu0 %v1233
    %1342 = vmatprep.subr.bf16.mxu0 %v1236
    %1343 = vmatpush1.bf16.msra.mxu0 %v1235
    %1344 = vmatprep.subr.bf16.mxu0 0
    %1345 = vmatpush1.bf16.msra.mxu0 0
    %1346 = vmatprep.subr.bf16.mxu0 0
    %1347 = vmatpush1.bf16.msra.mxu0 0
    %1348 = vmatprep.subr.bf16.mxu0 0
    %1349 = vmatpush1.bf16.msra.mxu0 0
    %1350 = vmatprep.subr.bf16.mxu0 0
    %1351 = vmatpush1.bf16.msra.mxu0 0
    %1352 = vmatprep.subr.bf16.mxu0 0
    %1353 = vmatpush1.bf16.msra.mxu0 0
    %1354 = vmatprep.subr.bf16.mxu0 0
    %1355 = vmatpush1.bf16.msra.mxu0 0
    %1356 = vmatprep.subr.bf16.mxu0 0
    %1357 = vmatpush1.bf16.msra.mxu0 0
    %1358 = vmatprep.subr.bf16.mxu0 0
    %1359 = vmatpush1.bf16.msra.mxu0 0
    %1360 = vmatprep.subr.bf16.mxu0 0
    %1361 = vmatpush1.bf16.msra.mxu0 0
    %1362 = vmatprep.subr.bf16.mxu0 0
    %1363 = vmatpush1.bf16.msra.mxu0 0
    %1364 = vmatprep.subr.bf16.mxu0 0
    %1365 = vmatpush1.bf16.msra.mxu0 0
    %1366 = vmatprep.subr.bf16.mxu0 0
    %1367 = vmatpush1.bf16.msra.mxu0 0
    %1368 = vmatprep.mubr.bf16.mxu0 0
    %1369 = vmatmul.mubr.bf16.gmra.mrb[0].mxu0 %v1334
    %v1370 = vpop.f32.mrb[0].mxu0
    %v1371 = vadd.f32 0.0, %v1370
    %v1372 = vpop.f32.mrb[0].mxu0
    %v1373 = vadd.f32 0.0, %v1372
    %v1374 = vpop.f32.mrb[0].mxu0
    %v1375 = vpop.f32.mrb[0].mxu0
    %1376 = vdwg.mxu0
    %v1379 = vrot.slane %v1371, 4
    %v1380 = vrot.slane %v1373, 4
    %v1383 = vadd.f32 %v1158, %v1379
    %v1384 = vadd.f32 %v1160, %v1380
    %v1385 = vxor.u32 %v1383, 2147483648
    %v1386 = vxor.u32 %v1384, 2147483648
    %v1387 = vmul.f32 %v1385, 1.442695
    %v1388 = vpow.pop %v1387
    %v1389 = vmul.f32 %v1386, 1.442695
    %v1390 = vpow.pop %v1389
    %v1391 = vadd.f32 %v1388, 1.0
    %v1392 = vadd.f32 %v1390, 1.0
    %v1393 = vrcp.pop %v1391
    %v1394 = vmul.f32 1.0, %v1393
    %v1395 = vrcp.pop %v1392
    %v1396 = vmul.f32 1.0, %v1395
    %v1397 = vtanh.pop %v1384
    %v1399 = vrot.slane %v1323, 6
    %v1401 = vmul.f32 %v1394, %v1399
    %1403 = vrot.lane.b32.xlu0 %v1397, 64
    %v1404 = vpop.permute.xlu0 %1403
    %v1406 = vmul.f32 %v1394, %v1404
    %1408 = vrot.lane.b32.xlu0 %v1406, 64
    %v1409 = vpop.permute.xlu0 %1408
    %v1411 = vadd.f32 %v1401, %v1409
    %v1412 = vtanh.pop %v1411
    %1414 = vrot.lane.b32.xlu0 %v1412, 64
    %v1415 = vpop.permute.xlu0 %1414
    %v1417 = vmul.f32 %v1396, %v1415
    %v1418 = vpack.c.bf16 %v1417, %v1417
    %v1420 = vrot.slane %v1418, 2
    %v1422 = vsel %vm350, %v1420, 0
    %1424 = vmatprep.subr.bf16.mxu0 %v1230
    %1425 = vmatpush1.bf16.msra.mxu0 %v1229
    %1426 = vmatprep.subr.bf16.mxu0 %v1232
    %1427 = vmatpush1.bf16.msra.mxu0 %v1231
    %1428 = vmatprep.subr.bf16.mxu0 %v1234
    %1429 = vmatpush1.bf16.msra.mxu0 %v1233
    %1430 = vmatprep.subr.bf16.mxu0 %v1236
    %1431 = vmatpush1.bf16.msra.mxu0 %v1235
    %1432 = vmatprep.subr.bf16.mxu0 0
    %1433 = vmatpush1.bf16.msra.mxu0 0
    %1434 = vmatprep.subr.bf16.mxu0 0
    %1435 = vmatpush1.bf16.msra.mxu0 0
    %1436 = vmatprep.subr.bf16.mxu0 0
    %1437 = vmatpush1.bf16.msra.mxu0 0
    %1438 = vmatprep.subr.bf16.mxu0 0
    %1439 = vmatpush1.bf16.msra.mxu0 0
    %1440 = vmatprep.subr.bf16.mxu0 0
    %1441 = vmatpush1.bf16.msra.mxu0 0
    %1442 = vmatprep.subr.bf16.mxu0 0
    %1443 = vmatpush1.bf16.msra.mxu0 0
    %1444 = vmatprep.subr.bf16.mxu0 0
    %1445 = vmatpush1.bf16.msra.mxu0 0
    %1446 = vmatprep.subr.bf16.mxu0 0
    %1447 = vmatpush1.bf16.msra.mxu0 0
    %1448 = vmatprep.subr.bf16.mxu0 0
    %1449 = vmatpush1.bf16.msra.mxu0 0
    %1450 = vmatprep.subr.bf16.mxu0 0
    %1451 = vmatpush1.bf16.msra.mxu0 0
    %1452 = vmatprep.subr.bf16.mxu0 0
    %1453 = vmatpush1.bf16.msra.mxu0 0
    %1454 = vmatprep.subr.bf16.mxu0 0
    %1455 = vmatpush1.bf16.msra.mxu0 0
    %1456 = vmatprep.mubr.bf16.mxu0 0
    %1457 = vmatmul.mubr.bf16.gmra.mrb[0].mxu0 %v1422
    %v1458 = vpop.f32.mrb[0].mxu0
    %v1459 = vadd.f32 0.0, %v1458
    %v1460 = vpop.f32.mrb[0].mxu0
    %v1461 = vadd.f32 0.0, %v1460
    %v1462 = vpop.f32.mrb[0].mxu0
    %v1463 = vpop.f32.mrb[0].mxu0
    %1464 = vdwg.mxu0
    %v1467 = vrot.slane %v1459, 2
    %v1468 = vrot.slane %v1461, 2
    %v1471 = vadd.f32 %v1158, %v1467
    %v1472 = vadd.f32 %v1160, %v1468
    %v1473 = vxor.u32 %v1471, 2147483648
    %v1474 = vxor.u32 %v1472, 2147483648
    %v1475 = vmul.f32 %v1473, 1.442695
    %v1476 = vpow.pop %v1475
    %v1477 = vmul.f32 %v1474, 1.442695
    %v1478 = vpow.pop %v1477
    %v1479 = vadd.f32 %v1476, 1.0
    %v1480 = vadd.f32 %v1478, 1.0
    %v1481 = vrcp.pop %v1479
    %v1482 = vmul.f32 1.0, %v1481
    %v1483 = vrcp.pop %v1480
    %v1484 = vmul.f32 1.0, %v1483
    %v1485 = vtanh.pop %v1472
    %v1487 = vrot.slane %v1411, 6
    %v1489 = vmul.f32 %v1482, %v1487
    %1491 = vrot.lane.b32.xlu0 %v1485, 64
    %v1492 = vpop.permute.xlu0 %1491
    %v1494 = vmul.f32 %v1482, %v1492
    %1496 = vrot.lane.b32.xlu0 %v1494, 64
    %v1497 = vpop.permute.xlu0 %1496
    %v1499 = vadd.f32 %v1489, %v1497
    %v1500 = vtanh.pop %v1499
    %1502 = vrot.lane.b32.xlu0 %v1500, 64
    %v1503 = vpop.permute.xlu0 %1502
    %v1505 = vmul.f32 %v1484, %v1503
    %v1506 = vpack.c.bf16 %v1505, %v1505
    %v1508 = vrot.slane %v1506, 3
    %v1510 = vsel %vm350, %v1508, 0
    %1512 = vmatprep.subr.bf16.mxu0 %v1230
    %1513 = vmatpush1.bf16.msra.mxu0 %v1229
    %1514 = vmatprep.subr.bf16.mxu0 %v1232
    %1515 = vmatpush1.bf16.msra.mxu0 %v1231
    %1516 = vmatprep.subr.bf16.mxu0 %v1234
    %1517 = vmatpush1.bf16.msra.mxu0 %v1233
    %1518 = vmatprep.subr.bf16.mxu0 %v1236
    %1519 = vmatpush1.bf16.msra.mxu0 %v1235
    %1520 = vmatprep.subr.bf16.mxu0 0
    %1521 = vmatpush1.bf16.msra.mxu0 0
    %1522 = vmatprep.subr.bf16.mxu0 0
    %1523 = vmatpush1.bf16.msra.mxu0 0
    %1524 = vmatprep.subr.bf16.mxu0 0
    %1525 = vmatpush1.bf16.msra.mxu0 0
    %1526 = vmatprep.subr.bf16.mxu0 0
    %1527 = vmatpush1.bf16.msra.mxu0 0
    %1528 = vmatprep.subr.bf16.mxu0 0
    %1529 = vmatpush1.bf16.msra.mxu0 0
    %1530 = vmatprep.subr.bf16.mxu0 0
    %1531 = vmatpush1.bf16.msra.mxu0 0
    %1532 = vmatprep.subr.bf16.mxu0 0
    %1533 = vmatpush1.bf16.msra.mxu0 0
    %1534 = vmatprep.subr.bf16.mxu0 0
    %1535 = vmatpush1.bf16.msra.mxu0 0
    %1536 = vmatprep.subr.bf16.mxu0 0
    %1537 = vmatpush1.bf16.msra.mxu0 0
    %1538 = vmatprep.subr.bf16.mxu0 0
    %1539 = vmatpush1.bf16.msra.mxu0 0
    %1540 = vmatprep.subr.bf16.mxu0 0
    %1541 = vmatpush1.bf16.msra.mxu0 0
    %1542 = vmatprep.subr.bf16.mxu0 0
    %1543 = vmatpush1.bf16.msra.mxu0 0
    %1544 = vmatprep.mubr.bf16.mxu0 0
    %1545 = vmatmul.mubr.bf16.gmra.mrb[0].mxu0 %v1510
    %v1546 = vpop.f32.mrb[0].mxu0
    %v1547 = vadd.f32 0.0, %v1546
    %v1548 = vpop.f32.mrb[0].mxu0
    %v1549 = vadd.f32 0.0, %v1548
    %v1550 = vpop.f32.mrb[0].mxu0
    %v1551 = vpop.f32.mrb[0].mxu0
    %1552 = vdwg.mxu0
    %v1553 = vadd.f32 %v1162, %v1547
    %v1554 = vadd.f32 %v1164, %v1549
    %v1555 = vxor.u32 %v1553, 2147483648
    %v1556 = vxor.u32 %v1554, 2147483648
    %v1557 = vmul.f32 %v1555, 1.442695
    %v1558 = vpow.pop %v1557
    %v1559 = vmul.f32 %v1556, 1.442695
    %v1560 = vpow.pop %v1559
    %v1561 = vadd.f32 %v1558, 1.0
    %v1562 = vadd.f32 %v1560, 1.0
    %v1563 = vrcp.pop %v1561
    %v1564 = vmul.f32 1.0, %v1563
    %v1565 = vrcp.pop %v1562
    %v1566 = vmul.f32 1.0, %v1565
    %v1567 = vtanh.pop %v1554
    %v1569 = vrot.slane %v1499, 6
    %v1571 = vmul.f32 %v1564, %v1569
    %1573 = vrot.lane.b32.xlu0 %v1567, 64
    %v1574 = vpop.permute.xlu0 %1573
    %v1576 = vmul.f32 %v1564, %v1574
    %1578 = vrot.lane.b32.xlu0 %v1576, 64
    %v1579 = vpop.permute.xlu0 %1578
    %v1581 = vadd.f32 %v1571, %v1579
    %v1582 = vtanh.pop %v1581
    %1584 = vrot.lane.b32.xlu0 %v1582, 64
    %v1585 = vpop.permute.xlu0 %1584
    %v1587 = vmul.f32 %v1566, %v1585
    %v1588 = vpack.c.bf16 %v1587, %v1587
    %v1590 = vsel %vm350, %v1588, 0
    %1592 = vmatprep.subr.bf16.mxu0 %v1230
    %1593 = vmatpush1.bf16.msra.mxu0 %v1229
    %1594 = vmatprep.subr.bf16.mxu0 %v1232
    %1595 = vmatpush1.bf16.msra.mxu0 %v1231
    %1596 = vmatprep.subr.bf16.mxu0 %v1234
    %1597 = vmatpush1.bf16.msra.mxu0 %v1233
    %1598 = vmatprep.subr.bf16.mxu0 %v1236
    %1599 = vmatpush1.bf16.msra.mxu0 %v1235
    %1600 = vmatprep.subr.bf16.mxu0 0
    %1601 = vmatpush1.bf16.msra.mxu0 0
    %1602 = vmatprep.subr.bf16.mxu0 0
    %1603 = vmatpush1.bf16.msra.mxu0 0
    %1604 = vmatprep.subr.bf16.mxu0 0
    %1605 = vmatpush1.bf16.msra.mxu0 0
    %1606 = vmatprep.subr.bf16.mxu0 0
    %1607 = vmatpush1.bf16.msra.mxu0 0
    %1608 = vmatprep.subr.bf16.mxu0 0
    %1609 = vmatpush1.bf16.msra.mxu0 0
    %1610 = vmatprep.subr.bf16.mxu0 0
    %1611 = vmatpush1.bf16.msra.mxu0 0
    %1612 = vmatprep.subr.bf16.mxu0 0
    %1613 = vmatpush1.bf16.msra.mxu0 0
    %1614 = vmatprep.subr.bf16.mxu0 0
    %1615 = vmatpush1.bf16.msra.mxu0 0
    %1616 = vmatprep.subr.bf16.mxu0 0
    %1617 = vmatpush1.bf16.msra.mxu0 0
    %1618 = vmatprep.subr.bf16.mxu0 0
    %1619 = vmatpush1.bf16.msra.mxu0 0
    %1620 = vmatprep.subr.bf16.mxu0 0
    %1621 = vmatpush1.bf16.msra.mxu0 0
    %1622 = vmatprep.subr.bf16.mxu0 0
    %1623 = vmatpush1.bf16.msra.mxu0 0
    %1624 = vmatprep.mubr.bf16.mxu0 0
    %1625 = vmatmul.mubr.bf16.gmra.mrb[0].mxu0 %v1590
    %v1626 = vpop.f32.mrb[0].mxu0
    %v1627 = vadd.f32 0.0, %v1626
    %v1628 = vpop.f32.mrb[0].mxu0
    %v1629 = vadd.f32 0.0, %v1628
    %v1630 = vpop.f32.mrb[0].mxu0
    %v1631 = vpop.f32.mrb[0].mxu0
    %1632 = vdwg.mxu0
    %v1635 = vrot.slane %v1627, 6
    %v1636 = vrot.slane %v1629, 6
    %v1639 = vadd.f32 %v1162, %v1635
    %v1640 = vadd.f32 %v1164, %v1636
    %v1641 = vxor.u32 %v1639, 2147483648
    %v1642 = vxor.u32 %v1640, 2147483648
    %v1643 = vmul.f32 %v1641, 1.442695
    %v1644 = vpow.pop %v1643
    %v1645 = vmul.f32 %v1642, 1.442695
    %v1646 = vpow.pop %v1645
    %v1647 = vadd.f32 %v1644, 1.0
    %v1648 = vadd.f32 %v1646, 1.0
    %v1649 = vrcp.pop %v1647
    %v1650 = vmul.f32 1.0, %v1649
    %v1651 = vrcp.pop %v1648
    %v1652 = vmul.f32 1.0, %v1651
    %v1653 = vtanh.pop %v1640
    %v1655 = vrot.slane %v1581, 6
    %v1657 = vmul.f32 %v1650, %v1655
    %1659 = vrot.lane.b32.xlu0 %v1653, 64
    %v1660 = vpop.permute.xlu0 %1659
    %v1662 = vmul.f32 %v1650, %v1660
    %1664 = vrot.lane.b32.xlu0 %v1662, 64
    %v1665 = vpop.permute.xlu0 %1664
    %v1667 = vadd.f32 %v1657, %v1665
    %v1668 = vtanh.pop %v1667
    %1670 = vrot.lane.b32.xlu0 %v1668, 64
    %v1671 = vpop.permute.xlu0 %1670
    %v1673 = vmul.f32 %v1652, %v1671
    %v1674 = vpack.c.bf16 %v1673, %v1673
    %v1676 = vrot.slane %v1674, 1
    %v1678 = vsel %vm350, %v1676, 0
    %1680 = vmatprep.subr.bf16.mxu0 %v1230
    %1681 = vmatpush1.bf16.msra.mxu0 %v1229
    %1682 = vmatprep.subr.bf16.mxu0 %v1232
    %1683 = vmatpush1.bf16.msra.mxu0 %v1231
    %1684 = vmatprep.subr.bf16.mxu0 %v1234
    %1685 = vmatpush1.bf16.msra.mxu0 %v1233
    %1686 = vmatprep.subr.bf16.mxu0 %v1236
    %1687 = vmatpush1.bf16.msra.mxu0 %v1235
    %1688 = vmatprep.subr.bf16.mxu0 0
    %1689 = vmatpush1.bf16.msra.mxu0 0
    %1690 = vmatprep.subr.bf16.mxu0 0
    %1691 = vmatpush1.bf16.msra.mxu0 0
    %1692 = vmatprep.subr.bf16.mxu0 0
    %1693 = vmatpush1.bf16.msra.mxu0 0
    %1694 = vmatprep.subr.bf16.mxu0 0
    %1695 = vmatpush1.bf16.msra.mxu0 0
    %1696 = vmatprep.subr.bf16.mxu0 0
    %1697 = vmatpush1.bf16.msra.mxu0 0
    %1698 = vmatprep.subr.bf16.mxu0 0
    %1699 = vmatpush1.bf16.msra.mxu0 0
    %1700 = vmatprep.subr.bf16.mxu0 0
    %1701 = vmatpush1.bf16.msra.mxu0 0
    %1702 = vmatprep.subr.bf16.mxu0 0
    %1703 = vmatpush1.bf16.msra.mxu0 0
    %1704 = vmatprep.subr.bf16.mxu0 0
    %1705 = vmatpush1.bf16.msra.mxu0 0
    %1706 = vmatprep.subr.bf16.mxu0 0
    %1707 = vmatpush1.bf16.msra.mxu0 0
    %1708 = vmatprep.subr.bf16.mxu0 0
    %1709 = vmatpush1.bf16.msra.mxu0 0
    %1710 = vmatprep.subr.bf16.mxu0 0
    %1711 = vmatpush1.bf16.msra.mxu0 0
    %1712 = vmatprep.mubr.bf16.mxu0 0
    %1713 = vmatmul.mubr.bf16.gmra.mrb[0].mxu0 %v1678
    %v1714 = vpop.f32.mrb[0].mxu0
    %v1715 = vadd.f32 0.0, %v1714
    %v1716 = vpop.f32.mrb[0].mxu0
    %v1717 = vadd.f32 0.0, %v1716
    %v1718 = vpop.f32.mrb[0].mxu0
    %v1719 = vpop.f32.mrb[0].mxu0
    %1720 = vdwg.mxu0
    %v1723 = vrot.slane %v1715, 4
    %v1724 = vrot.slane %v1717, 4
    %v1727 = vadd.f32 %v1162, %v1723
    %v1728 = vadd.f32 %v1164, %v1724
    %v1729 = vxor.u32 %v1727, 2147483648
    %v1730 = vxor.u32 %v1728, 2147483648
    %v1731 = vmul.f32 %v1729, 1.442695
    %v1732 = vpow.pop %v1731
    %v1733 = vmul.f32 %v1730, 1.442695
    %v1734 = vpow.pop %v1733
    %v1735 = vadd.f32 %v1732, 1.0
    %v1736 = vadd.f32 %v1734, 1.0
    %v1737 = vrcp.pop %v1735
    %v1738 = vmul.f32 1.0, %v1737
    %v1739 = vrcp.pop %v1736
    %v1740 = vmul.f32 1.0, %v1739
    %v1741 = vtanh.pop %v1728
    %v1743 = vrot.slane %v1667, 6
    %v1745 = vmul.f32 %v1738, %v1743
    %1747 = vrot.lane.b32.xlu0 %v1741, 64
    %v1748 = vpop.permute.xlu0 %1747
    %v1750 = vmul.f32 %v1738, %v1748
    %1752 = vrot.lane.b32.xlu0 %v1750, 64
    %v1753 = vpop.permute.xlu0 %1752
    %v1755 = vadd.f32 %v1745, %v1753
    %v1756 = vtanh.pop %v1755
    %1758 = vrot.lane.b32.xlu0 %v1756, 64
    %v1759 = vpop.permute.xlu0 %1758
    %v1761 = vmul.f32 %v1740, %v1759
    %v1762 = vpack.c.bf16 %v1761, %v1761
    %v1764 = vrot.slane %v1762, 2
    %v1766 = vsel %vm350, %v1764, 0
    %1768 = vmatprep.subr.bf16.mxu0 %v1230
    %1769 = vmatpush1.bf16.msra.mxu0 %v1229
    %1770 = vmatprep.subr.bf16.mxu0 %v1232
    %1771 = vmatpush1.bf16.msra.mxu0 %v1231
    %1772 = vmatprep.subr.bf16.mxu0 %v1234
    %1773 = vmatpush1.bf16.msra.mxu0 %v1233
    %1774 = vmatprep.subr.bf16.mxu0 %v1236
    %1775 = vmatpush1.bf16.msra.mxu0 %v1235
    %1776 = vmatprep.subr.bf16.mxu0 0
    %1777 = vmatpush1.bf16.msra.mxu0 0
    %1778 = vmatprep.subr.bf16.mxu0 0
    %1779 = vmatpush1.bf16.msra.mxu0 0
    %1780 = vmatprep.subr.bf16.mxu0 0
    %1781 = vmatpush1.bf16.msra.mxu0 0
    %1782 = vmatprep.subr.bf16.mxu0 0
    %1783 = vmatpush1.bf16.msra.mxu0 0
    %1784 = vmatprep.subr.bf16.mxu0 0
    %1785 = vmatpush1.bf16.msra.mxu0 0
    %1786 = vmatprep.subr.bf16.mxu0 0
    %1787 = vmatpush1.bf16.msra.mxu0 0
    %1788 = vmatprep.subr.bf16.mxu0 0
    %1789 = vmatpush1.bf16.msra.mxu0 0
    %1790 = vmatprep.subr.bf16.mxu0 0
    %1791 = vmatpush1.bf16.msra.mxu0 0
    %1792 = vmatprep.subr.bf16.mxu0 0
    %1793 = vmatpush1.bf16.msra.mxu0 0
    %1794 = vmatprep.subr.bf16.mxu0 0
    %1795 = vmatpush1.bf16.msra.mxu0 0
    %1796 = vmatprep.subr.bf16.mxu0 0
    %1797 = vmatpush1.bf16.msra.mxu0 0
    %1798 = vmatprep.subr.bf16.mxu0 0
    %1799 = vmatpush1.bf16.msra.mxu0 0
    %1800 = vmatprep.mubr.bf16.mxu0 0
    %1801 = vmatmul.mubr.bf16.gmra.mrb[0].mxu0 %v1766
    %v1802 = vpop.f32.mrb[0].mxu0
    %v1803 = vadd.f32 0.0, %v1802
    %v1804 = vpop.f32.mrb[0].mxu0
    %v1805 = vadd.f32 0.0, %v1804
    %v1806 = vpop.f32.mrb[0].mxu0
    %v1807 = vpop.f32.mrb[0].mxu0
    %1808 = vdwg.mxu0
    %v1811 = vrot.slane %v1803, 2
    %v1812 = vrot.slane %v1805, 2
    %v1815 = vadd.f32 %v1162, %v1811
    %v1816 = vadd.f32 %v1164, %v1812
    %v1817 = vxor.u32 %v1815, 2147483648
    %v1818 = vxor.u32 %v1816, 2147483648
    %v1819 = vmul.f32 %v1817, 1.442695
    %v1820 = vpow.pop %v1819
    %v1821 = vmul.f32 %v1818, 1.442695
    %v1822 = vpow.pop %v1821
    %v1823 = vadd.f32 %v1820, 1.0
    %v1824 = vadd.f32 %v1822, 1.0
    %v1825 = vrcp.pop %v1823
    %v1826 = vmul.f32 1.0, %v1825
    %v1827 = vrcp.pop %v1824
    %v1828 = vmul.f32 1.0, %v1827
    %v1829 = vtanh.pop %v1816
    %v1831 = vrot.slane %v1755, 6
    %v1833 = vmul.f32 %v1826, %v1831
    %1835 = vrot.lane.b32.xlu0 %v1829, 64
    %v1836 = vpop.permute.xlu0 %1835
    %v1838 = vmul.f32 %v1826, %v1836
    %1840 = vrot.lane.b32.xlu0 %v1838, 64
    %v1841 = vpop.permute.xlu0 %1840
    %v1843 = vadd.f32 %v1833, %v1841
    %v1844 = vtanh.pop %v1843
    %1846 = vrot.lane.b32.xlu0 %v1844, 64
    %v1847 = vpop.permute.xlu0 %1846
    %v1849 = vmul.f32 %v1828, %v1847
    %v1851 = vrot.slane %v1329, 2
    %1852 = vrot.lane.b32.xlu0 %v1851, 64
    %v1853 = vpop.permute.xlu0 %1852
    %v1856 = vrot.slane %v1417, 4
    %v1859 = vrot.slane %v1505, 6
    %1860 = vrot.lane.b32.xlu0 %v1859, 64
    %v1861 = vpop.permute.xlu0 %1860
    %v1864 = vrot.slane %v1673, 2
    %1865 = vrot.lane.b32.xlu0 %v1864, 64
    %v1866 = vpop.permute.xlu0 %1865
    %v1869 = vrot.slane %v1761, 4
    %v1872 = vrot.slane %v1849, 6
    %1873 = vrot.lane.b32.xlu0 %v1872, 64
    %v1874 = vpop.permute.xlu0 %1873
    %v1876 = vsel %vm350, %v1203, %v1853
    %v1877 = vsel %vm350, %v1856, %v1861
    %v1878 = vsel %vm350, %v1587, %v1866
    %v1879 = vsel %vm350, %v1869, %v1874
    %v1880 = vpack.c.bf16 %v1876, %v1876
    %v1881 = vpack.c.bf16 %v1877, %v1877
    %v1882 = vpack.c.bf16 %v1878, %v1878
    %v1883 = vpack.c.bf16 %v1879, %v1879
    %v1884 = vld [vmem:[%s8] sm:$0xf]
    %v1885 = vld [vmem:[%s8 + $0x4] sm:$0xf]
    %v1886 = vld [vmem:[%s8 + $0x8] sm:$0xf]
    %v1887 = vld [vmem:[%s8 + $0xc] sm:$0xf]
    %v1888 = vld [vmem:[%s8 + $0x10] sm:$0xf]
    %v1889 = vld [vmem:[%s8 + $0x14] sm:$0xf]
    %v1890 = vld [vmem:[%s8 + $0x18] sm:$0xf]
    %v1891 = vld [vmem:[%s8 + $0x1c] sm:$0xf]
    %v1892 = vld [vmem:[%s8 + $0x20] sm:$0xf]
    %v1893 = vld [vmem:[%s8 + $0x24] sm:$0xf]
    %v1894 = vld [vmem:[%s8 + $0x28] sm:$0xf]
    %v1895 = vld [vmem:[%s8 + $0x2c] sm:$0xf]
    %v1896 = vld [vmem:[%s8 + $0x30] sm:$0xf]
    %v1897 = vld [vmem:[%s8 + $0x34] sm:$0xf]
    %v1898 = vld [vmem:[%s8 + $0x38] sm:$0xf]
    %v1899 = vld [vmem:[%s8 + $0x3c] sm:$0xf]
    %v1900 = vld [vmem:[%s8 + $0x40] sm:$0xf]
    %v1901 = vld [vmem:[%s8 + $0x44] sm:$0xf]
    %v1902 = vld [vmem:[%s8 + $0x48] sm:$0xf]
    %v1903 = vld [vmem:[%s8 + $0x4c] sm:$0xf]
    %v1904 = vld [vmem:[%s8 + $0x50] sm:$0xf]
    %v1905 = vld [vmem:[%s8 + $0x54] sm:$0xf]
    %v1906 = vld [vmem:[%s8 + $0x58] sm:$0xf]
    %v1907 = vld [vmem:[%s8 + $0x5c] sm:$0xf]
    %v1908 = vld [vmem:[%s8 + $0x60] sm:$0xf]
    %v1909 = vld [vmem:[%s8 + $0x64] sm:$0xf]
    %v1910 = vld [vmem:[%s8 + $0x68] sm:$0xf]
    %v1911 = vld [vmem:[%s8 + $0x6c] sm:$0xf]
    %v1912 = vld [vmem:[%s8 + $0x70] sm:$0xf]
    %v1913 = vld [vmem:[%s8 + $0x74] sm:$0xf]
    %v1914 = vld [vmem:[%s8 + $0x78] sm:$0xf]
    %v1915 = vld [vmem:[%s8 + $0x7c] sm:$0xf]
    %v1916 = vld [vmem:[%s8 + $0x80] sm:$0xf]
    %v1917 = vld [vmem:[%s8 + $0x84] sm:$0xf]
    %v1918 = vld [vmem:[%s8 + $0x88] sm:$0xf]
    %v1919 = vld [vmem:[%s8 + $0x8c] sm:$0xf]
    %v1920 = vld [vmem:[%s8 + $0x90] sm:$0xf]
    %v1921 = vld [vmem:[%s8 + $0x94] sm:$0xf]
    %v1922 = vld [vmem:[%s8 + $0x98] sm:$0xf]
    %v1923 = vld [vmem:[%s8 + $0x9c] sm:$0xf]
    %v1924 = vld [vmem:[%s8 + $0xa0] sm:$0xf]
    %v1925 = vld [vmem:[%s8 + $0xa4] sm:$0xf]
    %v1926 = vld [vmem:[%s8 + $0xa8] sm:$0xf]
    %v1927 = vld [vmem:[%s8 + $0xac] sm:$0xf]
    %v1928 = vld [vmem:[%s8 + $0xb0] sm:$0xf]
    %v1929 = vld [vmem:[%s8 + $0xb4] sm:$0xf]
    %v1930 = vld [vmem:[%s8 + $0xb8] sm:$0xf]
    %v1931 = vld [vmem:[%s8 + $0xbc] sm:$0xf]
    %v1932 = vld [vmem:[%s8 + $0xc0] sm:$0xf]
    %v1933 = vld [vmem:[%s8 + $0xc4] sm:$0xf]
    %v1934 = vld [vmem:[%s8 + $0xc8] sm:$0xf]
    %v1935 = vld [vmem:[%s8 + $0xcc] sm:$0xf]
    %v1936 = vld [vmem:[%s8 + $0xd0] sm:$0xf]
    %v1937 = vld [vmem:[%s8 + $0xd4] sm:$0xf]
    %v1938 = vld [vmem:[%s8 + $0xd8] sm:$0xf]
    %v1939 = vld [vmem:[%s8 + $0xdc] sm:$0xf]
    %v1940 = vld [vmem:[%s8 + $0xe0] sm:$0xf]
    %v1941 = vld [vmem:[%s8 + $0xe4] sm:$0xf]
    %v1942 = vld [vmem:[%s8 + $0xe8] sm:$0xf]
    %v1943 = vld [vmem:[%s8 + $0xec] sm:$0xf]
    %v1944 = vld [vmem:[%s8 + $0xf0] sm:$0xf]
    %v1945 = vld [vmem:[%s8 + $0xf4] sm:$0xf]
    %v1946 = vld [vmem:[%s8 + $0xf8] sm:$0xf]
    %v1947 = vld [vmem:[%s8 + $0xfc] sm:$0xf]
    %v1948 = vld [vmem:[%s9] sm:$0x1]
    %v1950 = vlaneseq
    %v1951 = vshrl.u32 %v1950, 7
    %v1952 = vsub.s32 0, %v1951
    %v1953 = vrot.slane %v1948, %v1952
    %v2019 = vunpack.c.l.b16 %v1884
    %v2020 = vunpack.c.l.b16 %v1885
    %v2021 = vunpack.c.l.b16 %v1886
    %v2022 = vunpack.c.l.b16 %v1887
    %v2023 = vunpack.c.l.b16 %v1888
    %v2024 = vunpack.c.l.b16 %v1889
    %v2025 = vunpack.c.l.b16 %v1890
    %v2026 = vunpack.c.l.b16 %v1891
    %v2027 = vunpack.c.l.b16 %v1892
    %v2028 = vunpack.c.l.b16 %v1893
    %v2029 = vunpack.c.l.b16 %v1894
    %v2030 = vunpack.c.l.b16 %v1895
    %v2031 = vunpack.c.l.b16 %v1896
    %v2032 = vunpack.c.l.b16 %v1897
    %v2033 = vunpack.c.l.b16 %v1898
    %v2034 = vunpack.c.l.b16 %v1899
    %v2035 = vunpack.c.l.b16 %v1900
    %v2036 = vunpack.c.l.b16 %v1901
    %v2037 = vunpack.c.l.b16 %v1902
    %v2038 = vunpack.c.l.b16 %v1903
    %v2039 = vunpack.c.l.b16 %v1904
    %v2040 = vunpack.c.l.b16 %v1905
    %v2041 = vunpack.c.l.b16 %v1906
    %v2042 = vunpack.c.l.b16 %v1907
    %v2043 = vunpack.c.l.b16 %v1908
    %v2044 = vunpack.c.l.b16 %v1909
    %v2045 = vunpack.c.l.b16 %v1910
    %v2046 = vunpack.c.l.b16 %v1911
    %v2047 = vunpack.c.l.b16 %v1912
    %v2048 = vunpack.c.l.b16 %v1913
    %v2049 = vunpack.c.l.b16 %v1914
    %v2050 = vunpack.c.l.b16 %v1915
    %v2051 = vunpack.c.l.b16 %v1916
    %v2052 = vunpack.c.l.b16 %v1917
    %v2053 = vunpack.c.l.b16 %v1918
    %v2054 = vunpack.c.l.b16 %v1919
    %v2055 = vunpack.c.l.b16 %v1920
    %v2056 = vunpack.c.l.b16 %v1921
    %v2057 = vunpack.c.l.b16 %v1922
    %v2058 = vunpack.c.l.b16 %v1923
    %v2059 = vunpack.c.l.b16 %v1924
    %v2060 = vunpack.c.l.b16 %v1925
    %v2061 = vunpack.c.l.b16 %v1926
    %v2062 = vunpack.c.l.b16 %v1927
    %v2063 = vunpack.c.l.b16 %v1928
    %v2064 = vunpack.c.l.b16 %v1929
    %v2065 = vunpack.c.l.b16 %v1930
    %v2066 = vunpack.c.l.b16 %v1931
    %v2067 = vunpack.c.l.b16 %v1932
    %v2068 = vunpack.c.l.b16 %v1933
    %v2069 = vunpack.c.l.b16 %v1934
    %v2070 = vunpack.c.l.b16 %v1935
    %v2071 = vunpack.c.l.b16 %v1936
    %v2072 = vunpack.c.l.b16 %v1937
    %v2073 = vunpack.c.l.b16 %v1938
    %v2074 = vunpack.c.l.b16 %v1939
    %v2075 = vunpack.c.l.b16 %v1940
    %v2076 = vunpack.c.l.b16 %v1941
    %v2077 = vunpack.c.l.b16 %v1942
    %v2078 = vunpack.c.l.b16 %v1943
    %v2079 = vunpack.c.l.b16 %v1944
    %v2080 = vunpack.c.l.b16 %v1945
    %v2081 = vunpack.c.l.b16 %v1946
    %v2082 = vunpack.c.l.b16 %v1947
    %v2083 = vpack.c.b16 %v2020, %v2019
    %v2084 = vpack.c.b16 %v2022, %v2021
    %v2085 = vpack.c.b16 %v2024, %v2023
    %v2086 = vpack.c.b16 %v2026, %v2025
    %v2087 = vpack.c.b16 %v2028, %v2027
    %v2088 = vpack.c.b16 %v2030, %v2029
    %v2089 = vpack.c.b16 %v2032, %v2031
    %v2090 = vpack.c.b16 %v2034, %v2033
    %v2091 = vpack.c.b16 %v2036, %v2035
    %v2092 = vpack.c.b16 %v2038, %v2037
    %v2093 = vpack.c.b16 %v2040, %v2039
    %v2094 = vpack.c.b16 %v2042, %v2041
    %v2095 = vpack.c.b16 %v2044, %v2043
    %v2096 = vpack.c.b16 %v2046, %v2045
    %v2097 = vpack.c.b16 %v2048, %v2047
    %v2098 = vpack.c.b16 %v2050, %v2049
    %v2099 = vpack.c.b16 %v2052, %v2051
    %v2100 = vpack.c.b16 %v2054, %v2053
    %v2101 = vpack.c.b16 %v2056, %v2055
    %v2102 = vpack.c.b16 %v2058, %v2057
    %v2103 = vpack.c.b16 %v2060, %v2059
    %v2104 = vpack.c.b16 %v2062, %v2061
    %v2105 = vpack.c.b16 %v2064, %v2063
    %v2106 = vpack.c.b16 %v2066, %v2065
    %v2107 = vpack.c.b16 %v2068, %v2067
    %v2108 = vpack.c.b16 %v2070, %v2069
    %v2109 = vpack.c.b16 %v2072, %v2071
    %v2110 = vpack.c.b16 %v2074, %v2073
    %v2111 = vpack.c.b16 %v2076, %v2075
    %v2112 = vpack.c.b16 %v2078, %v2077
    %v2113 = vpack.c.b16 %v2080, %v2079
    %v2114 = vpack.c.b16 %v2082, %v2081
    %2147 = vmatprep.subr.bf16.mxu0 0
    %2148 = vmatpush1.bf16.msra.mxu0 %v2083
    %2149 = vmatprep.subr.bf16.mxu0 0
    %2150 = vmatpush1.bf16.msra.mxu0 %v2084
    %2151 = vmatprep.subr.bf16.mxu0 0
    %2152 = vmatpush1.bf16.msra.mxu0 %v2085
    %2153 = vmatprep.subr.bf16.mxu0 0
    %2154 = vmatpush1.bf16.msra.mxu0 %v2086
    %2155 = vmatprep.subr.bf16.mxu0 0
    %2156 = vmatpush1.bf16.msra.mxu0 %v2087
    %2157 = vmatprep.subr.bf16.mxu0 0
    %2158 = vmatpush1.bf16.msra.mxu0 %v2088
    %2159 = vmatprep.subr.bf16.mxu0 0
    %2160 = vmatpush1.bf16.msra.mxu0 %v2089
    %2161 = vmatprep.subr.bf16.mxu0 0
    %2162 = vmatpush1.bf16.msra.mxu0 %v2090
    %2163 = vmatprep.subr.bf16.mxu0 0
    %2164 = vmatpush1.bf16.msra.mxu0 %v2091
    %2165 = vmatprep.subr.bf16.mxu0 0
    %2166 = vmatpush1.bf16.msra.mxu0 %v2092
    %2167 = vmatprep.subr.bf16.mxu0 0
    %2168 = vmatpush1.bf16.msra.mxu0 %v2093
    %2169 = vmatprep.subr.bf16.mxu0 0
    %2170 = vmatpush1.bf16.msra.mxu0 %v2094
    %2171 = vmatprep.subr.bf16.mxu0 0
    %2172 = vmatpush1.bf16.msra.mxu0 %v2095
    %2173 = vmatprep.subr.bf16.mxu0 0
    %2174 = vmatpush1.bf16.msra.mxu0 %v2096
    %2175 = vmatprep.subr.bf16.mxu0 0
    %2176 = vmatpush1.bf16.msra.mxu0 %v2097
    %2177 = vmatprep.subr.bf16.mxu0 0
    %2178 = vmatpush1.bf16.msra.mxu0 %v2098
    %2179 = vmatprep.mubr.bf16.mxu0 %v1881
    %2180 = vmatmul.mubr.bf16.gmra.mrb[0].mxu0 %v1880
    %v2181 = vpop.f32.mrb[0].mxu0
    %v2182 = vadd.f32 %v1953, %v2181
    %v2183 = vpop.f32.mrb[0].mxu0
    %v2184 = vpop.f32.mrb[0].mxu0
    %v2185 = vpop.f32.mrb[0].mxu0
    %2186 = vdwg.mxu0
    %2187 = vmatprep.subr.bf16.mxu0 0
    %2188 = vmatpush1.bf16.msra.mxu0 %v2099
    %2189 = vmatprep.subr.bf16.mxu0 0
    %2190 = vmatpush1.bf16.msra.mxu0 %v2100
    %2191 = vmatprep.subr.bf16.mxu0 0
    %2192 = vmatpush1.bf16.msra.mxu0 %v2101
    %2193 = vmatprep.subr.bf16.mxu0 0
    %2194 = vmatpush1.bf16.msra.mxu0 %v2102
    %2195 = vmatprep.subr.bf16.mxu0 0
    %2196 = vmatpush1.bf16.msra.mxu0 %v2103
    %2197 = vmatprep.subr.bf16.mxu0 0
    %2198 = vmatpush1.bf16.msra.mxu0 %v2104
    %2199 = vmatprep.subr.bf16.mxu0 0
    %2200 = vmatpush1.bf16.msra.mxu0 %v2105
    %2201 = vmatprep.subr.bf16.mxu0 0
    %2202 = vmatpush1.bf16.msra.mxu0 %v2106
    %2203 = vmatprep.subr.bf16.mxu0 0
    %2204 = vmatpush1.bf16.msra.mxu0 %v2107
    %2205 = vmatprep.subr.bf16.mxu0 0
    %2206 = vmatpush1.bf16.msra.mxu0 %v2108
    %2207 = vmatprep.subr.bf16.mxu0 0
    %2208 = vmatpush1.bf16.msra.mxu0 %v2109
    %2209 = vmatprep.subr.bf16.mxu0 0
    %2210 = vmatpush1.bf16.msra.mxu0 %v2110
    %2211 = vmatprep.subr.bf16.mxu0 0
    %2212 = vmatpush1.bf16.msra.mxu0 %v2111
    %2213 = vmatprep.subr.bf16.mxu0 0
    %2214 = vmatpush1.bf16.msra.mxu0 %v2112
    %2215 = vmatprep.subr.bf16.mxu0 0
    %2216 = vmatpush1.bf16.msra.mxu0 %v2113
    %2217 = vmatprep.subr.bf16.mxu0 0
    %2218 = vmatpush1.bf16.msra.mxu0 %v2114
    %2219 = vmatprep.mubr.bf16.mxu0 %v1883
    %2220 = vmatmul.mubr.bf16.gmra.mrb[0].mxu0 %v1882
    %v2221 = vpop.f32.mrb[0].mxu0
    %v2222 = vadd.f32 %v2182, %v2221
    %v2223 = vpop.f32.mrb[0].mxu0
    %v2224 = vpop.f32.mrb[0].mxu0
    %v2225 = vpop.f32.mrb[0].mxu0
    %2226 = vdwg.mxu0
    %vm2227 = vcmask 25600
    %2228 = vst.msk [vmem:[#allocation3] sm:$0x3] %vm2227, %v2222
    // Predicated region
    $region42: #{lstm_model_forward.1} parent=1 // pred_check
      _
    $region43: #{lstm_model_forward.1} parent=1 // pred_check_branch
      %2230 = sbr.rel (0) target = $region45
    $region44: #{lstm_model_forward.1} parent=1 // pred_region
      %s2232 = ssub.s32 32, 32
      %2233 = vsyncadd [#allocation4], %s2232
      %s2235 = sshll.u32 [#allocation3], 4
      %s2236 = int_to_ptr.vmem [resolvable:$true] %s2235
      %2238 = dma.vmem_to_hbm [thread:$0]  %s2236, 32, %s10, [#allocation4]
    $region45: #{lstm_model_forward.1} parent=1 // pred_fallthru
      _
    // Predicated region
    $region46: #{lstm_model_forward.1} parent=1 // pred_check
      _
    $region47: #{lstm_model_forward.1} parent=1 // pred_check_branch
      %2240 = sbr.rel (0) target = $region49
    $region48: #{lstm_model_forward.1} parent=1 // pred_region
      %2241 = dma.done [#allocation4], 32
    $region49: #{lstm_model_forward.1} parent=1 // pred_fallthru
      _
    %2242 = vsyncpa [#allocation4], 1

</llo_original>
